<compile_context>
chip_gen: v7x
topology: tpu7x:2x2x1
jax: 0.10.0
libtpu: 0.0.40
codegen_flags: <defaults>
</compile_context>

<pallas_src>
import functools
import math

import numpy as np

import jax
import jax.numpy as jnp
from jax import lax
from jax.experimental import pallas as pl
from jax.experimental.pallas import tpu as pltpu


_TARGET_BLOCK_BYTES = 4 * 1024 * 1024   # output block target (per review: 4-8 MiB)
_MIN_FAST_BLOCK_BYTES = 512 * 1024      # below this, prefer padded path over tiny tiles
_SEL_BYTES_CAP = 4 * 1024 * 1024        # cap on the constant selection matrix
_VMEM_LIMIT_BYTES = 48 * 1024 * 1024    # covers worst case, < v7x 64 MiB physical


def _round_up(x: int, m: int) -> int:
    return (x + m - 1) // m * m


def _choose_fold(c: int) -> int:
    """Labels per stored output row F, so the row width W = F*C is lane-dense."""
    if c % 128 == 0:
        return 1                                    # already a multiple of 128
    f = 128 if c <= 128 else 128 // math.gcd(c, 128)
    if f > 1 and f * (f * c) * 2 > _SEL_BYTES_CAP:
        return 1                                    # rare huge/odd C: masked-store fallback
    return f


def _pick_divisor_rows(r: int, target: int):
    """Largest multiple-of-8 divisor of r that is <= target (None if not found)."""
    t = min(target, r)
    t -= t % 8
    for cand in range(t, 7, -8):
        if r % cand == 0:
            return cand
    return None


def _one_hot_fold_kernel(sel_ref, colimb_ref, lbl_ref, out_ref, *, num_classes, n_limbs):
    """F>1 path: MXU lane-replication of labels + one compare per 8-bit limb.

    sel_ref:    (F, W) bf16, sel[f, q] = (q // C == f)           (constant)
    colimb_ref: (n_limbs, W) f32, limb_k(q % C)                  (constant)
    lbl_ref:    (tile_r, F) int32 labels
    out_ref:    (tile_r, W) one-hot output, W = F * C
    """
    # Sanitize: padding (-1) and out-of-range labels can never match a class.
    lbl = jnp.clip(lbl_ref[...], -1, num_classes)
    sel = sel_ref[...]
    colimb = colimb_ref[...]
    hit = None
    for k in range(n_limbs):
        limb = lbl if k == 0 else (lbl >> (8 * k))
        limb = (limb & 0xFF).astype(jnp.float32).astype(jnp.bfloat16)  # exact (<= 255)
        # rep[r, q] = limb(label[r, q // C]); exact: 0/1 weights, single hit per column.
        rep = jnp.dot(limb, sel, preferred_element_type=jnp.float32)
        eq = rep == colimb[k:k + 1, :]
        hit = eq if hit is None else (hit & eq)
    out_ref[...] = hit.astype(out_ref.dtype)


def _one_hot_direct_kernel(lbl_ref, out_ref):
    """F==1 path (C % 128 == 0, or rare fallback): single broadcast compare."""
    col = lax.broadcasted_iota(jnp.int32, (1, out_ref.shape[-1]), 1)
    # Out-of-range / negative labels never equal any column -> zero rows.
    out_ref[...] = (lbl_ref[...] == col).astype(out_ref.dtype)


@functools.partial(jax.jit, static_argnums=(1, 2))
def _one_hot_impl(label: jax.Array, num_classes: int, dtype) -> jax.Array:
    c = int(num_classes)
    orig_shape = label.shape
    flat = label.reshape(-1).astype(jnp.int32)
    n = flat.shape[0]
    if n == 0:
        return jnp.zeros(orig_shape + (c,), dtype)

    f = _choose_fold(c)
    w = f * c
    itemsize = np.dtype(dtype).itemsize
    row_bytes = w * itemsize
    target_rows = max(8, _TARGET_BLOCK_BYTES // row_bytes // 8 * 8)

    r_needed = -(-n // f)

    # Fast path: no label padding and (crucially) no post-kernel output slice.
    tile_r = None
    if n % f == 0 and r_needed % 8 == 0:
        cand = _pick_divisor_rows(r_needed, target_rows)
        if cand is not None and (cand == r_needed
                                 or cand * row_bytes >= _MIN_FAST_BLOCK_BYTES):
            tile_r = cand
            num_tiles = r_needed // cand
            r_total = r_needed
    if tile_r is None:
        # Padded path: exact-fit tiles; pad labels with -1 (-> all-zero rows).
        num_tiles = max(1, -(-r_needed // target_rows))
        tile_r = _round_up(-(-r_needed // num_tiles), 8)
        r_total = tile_r * num_tiles

    n_pad = r_total * f
    if n_pad != n:
        flat = jnp.pad(flat, (0, n_pad - n), constant_values=-1)
    lbl2d = flat.reshape(r_total, f)

    out_shape = jax.ShapeDtypeStruct((r_total, w), dtype)
    compiler_params = pltpu.CompilerParams(
        dimension_semantics=("parallel",),
        vmem_limit_bytes=_VMEM_LIMIT_BYTES,
    )

    if f == 1:
        out = pl.pallas_call(
            _one_hot_direct_kernel,
            out_shape=out_shape,
            grid_spec=pltpu.PrefetchScalarGridSpec(
                num_scalar_prefetch=0,
                grid=(num_tiles,),
                in_specs=[pl.BlockSpec((tile_r, 1), lambda i: (i, 0))],
                out_specs=pl.BlockSpec((tile_r, w), lambda i: (i, 0)),
            ),
            compiler_params=compiler_params,
        )(lbl2d)
    else:
        n_limbs = 1
        while (1 << (8 * n_limbs)) <= c:
            n_limbs += 1
        # Constant selection matrix: sel[f_idx, q] = (q // C == f_idx).
        fold_idx = jnp.arange(w, dtype=jnp.int32) // c
        sel = (fold_idx[None, :] ==
               jnp.arange(f, dtype=jnp.int32)[:, None]).astype(jnp.bfloat16)
        # Constant per-limb class indices: limb_k(q % C), exact in f32.
        col = jnp.arange(w, dtype=jnp.int32) % c
        colimb = jnp.stack(
            [((col >> (8 * k)) & 0xFF).astype(jnp.float32) for k in range(n_limbs)],
            axis=0)

        kernel = functools.partial(
            _one_hot_fold_kernel, num_classes=c, n_limbs=n_limbs)
        out = pl.pallas_call(
            kernel,
            out_shape=out_shape,
            grid_spec=pltpu.PrefetchScalarGridSpec(
                num_scalar_prefetch=0,
                grid=(num_tiles,),
                in_specs=[
                    pl.BlockSpec((f, w), lambda i: (0, 0)),         # sel (constant)
                    pl.BlockSpec((n_limbs, w), lambda i: (0, 0)),   # colimb (constant)
                    pl.BlockSpec((tile_r, f), lambda i: (i, 0)),    # labels
                ],
                out_specs=pl.BlockSpec((tile_r, w), lambda i: (i, 0)),
            ),
            compiler_params=compiler_params,
        )(sel, colimb, lbl2d)

    # (R, F*C) -> (R*F, C) is a contiguous, free reshape.
    out = out.reshape(r_total * f, c)
    if n_pad != n:
        out = out[:n]   # only on the padded path (full extra copy; avoided above)
    return out.reshape(*orig_shape, c)


def one_hot(label: jax.Array, num_classes: int, dtype=jnp.int32) -> jax.Array:
    """Pallas equivalent of torch.nn.functional.one_hot(label, num_classes)."""
    return _one_hot_impl(label, int(num_classes), np.dtype(dtype))


class OneHot:
    """Mirror of the PyTorch module; forward = one_hot kernel call."""

    def __init__(self, num_classes: int):
        self.num_classes = num_classes

    def __call__(self, label: jax.Array) -> jax.Array:
        return one_hot(label, self.num_classes)


if __name__ == "__main__":
    key = jax.random.PRNGKey(0)

    # 1) Fold/matmul path, 1 limb (C = 32), padded tail + slice path.
    num_classes = 32
    label = jax.random.randint(key, (2, 8), 0, num_classes, dtype=jnp.int32)
    module = OneHot(num_classes)
    result = jax.block_until_ready(module(label))
    assert result.shape == (2, 8, num_classes), result.shape
    ref = jax.nn.one_hot(label, num_classes, dtype=result.dtype)
    assert jnp.array_equal(result, ref), "one-hot mismatch (C=32)"

    # 2) C = 100 (does not divide 128): still lane-dense via the 128-label fold.
    lbl2 = jax.random.randint(jax.random.PRNGKey(1), (3, 5), 0, 100, dtype=jnp.int32)
    res2 = jax.block_until_ready(one_hot(lbl2, 100))
    assert jnp.array_equal(res2, jax.nn.one_hot(lbl2, 100, dtype=jnp.int32)), "C=100"

    # 3) C = 128 (multiple of 128): direct path, aligned fast path (no pad/slice).
    lbl3 = jax.random.randint(jax.random.PRNGKey(2), (16,), 0, 128, dtype=jnp.int32)
    res3 = jax.block_until_ready(one_hot(lbl3, 128))
    assert jnp.array_equal(res3, jax.nn.one_hot(lbl3, 128, dtype=jnp.int32)), "C=128"

    # 4) C = 1000 (> 128, two bf16 limbs), multi-tile aligned fast path.
    lbl4 = jax.random.randint(jax.random.PRNGKey(3), (2, 1024), 0, 1000, dtype=jnp.int32)
    res4 = jax.block_until_ready(one_hot(lbl4, 1000))
    assert jnp.array_equal(res4, jax.nn.one_hot(lbl4, 1000, dtype=jnp.int32)), "C=1000"

    # 5) Tiny C with negative / out-of-range labels -> all-zero rows.
    lbl5 = jnp.array([[-3, 0, 7, 99], [1, 2, 3, 8]], dtype=jnp.int32)
    res5 = jax.block_until_ready(one_hot(lbl5, 8))
    assert jnp.array_equal(res5, jax.nn.one_hot(lbl5, 8, dtype=jnp.int32)), "C=8/OOR"

    print("KERNEL_OK")
</pallas_src>

<mosaic_0001>
module attributes {stable_mosaic.version = 11 : i64} {
  func.func @_one_hot_fold_kernel(%arg0: i32, %arg1: memref<128x4096xbf16, #tpu.memory_space<vmem>>, %arg2: memref<1x4096xf32, #tpu.memory_space<vmem>>, %arg3: memref<8x128xi32, #tpu.memory_space<vmem>>, %arg4: memref<8x4096xi32, #tpu.memory_space<vmem>>) attributes {dimension_semantics = [#tpu.dimension_semantics<parallel>], iteration_bounds = array<i64: 1>, scalar_prefetch = 0 : i64, scratch_operands = 0 : i64, tpu.core_type = #tpu.core_type<tc>, window_params = [{pipeline_mode = #tpu.pipeline_mode<synchronous>, transform_indices = @transform_0, window_bounds = array<i64: 128, 4096>}, {pipeline_mode = #tpu.pipeline_mode<synchronous>, transform_indices = @transform_1, window_bounds = array<i64: 1, 4096>}, {transform_indices = @transform_2, window_bounds = array<i64: 8, 128>}, {transform_indices = @transform_3, window_bounds = array<i64: 8, 4096>}]} {
    %c0 = arith.constant 0 : index
    %c0_0 = arith.constant 0 : index
    %0 = vector.load %arg3[%c0, %c0_0] : memref<8x128xi32, #tpu.memory_space<vmem>>, vector<8x128xi32>
    %c-1_i32 = arith.constant -1 : i32
    %c32_i32 = arith.constant 32 : i32
    %1 = vector.broadcast %c-1_i32 : i32 to vector<8x128xi32>
    %2 = arith.maxsi %1, %0 : vector<8x128xi32>
    %3 = vector.broadcast %c32_i32 : i32 to vector<8x128xi32>
    %4 = arith.minsi %3, %2 : vector<8x128xi32>
    %c0_1 = arith.constant 0 : index
    %c0_2 = arith.constant 0 : index
    %5 = vector.load %arg1[%c0_1, %c0_2] : memref<128x4096xbf16, #tpu.memory_space<vmem>>, vector<128x4096xbf16>
    %c0_3 = arith.constant 0 : index
    %c0_4 = arith.constant 0 : index
    %6 = vector.load %arg2[%c0_3, %c0_4] : memref<1x4096xf32, #tpu.memory_space<vmem>>, vector<1x4096xf32>
    %c255_i32 = arith.constant 255 : i32
    %7 = vector.broadcast %c255_i32 : i32 to vector<8x128xi32>
    %8 = arith.andi %4, %7 : vector<8x128xi32>
    %9 = arith.sitofp %8 : vector<8x128xi32> to vector<8x128xf32>
    %10 = arith.truncf %9 : vector<8x128xf32> to vector<8x128xbf16>
    %cst = arith.constant dense<0.000000e+00> : vector<8x4096xf32>
    %11 = tpu.matmul %10, %5, %cst {dimension_numbers = #tpu.dot_dimension_numbers<[1], [0], [0], [1], [0, 0, 1, 1], [], []>} : vector<8x128xbf16>, vector<128x4096xbf16>, vector<8x4096xf32> -> vector<8x4096xf32>
    %12 = vector.broadcast %6 : vector<1x4096xf32> to vector<8x4096xf32>
    %13 = arith.cmpf oeq, %11, %12 : vector<8x4096xf32>
    %14 = arith.extui %13 : vector<8x4096xi1> to vector<8x4096xi32>
    %c0_5 = arith.constant 0 : index
    %c0_6 = arith.constant 0 : index
    %15 = vector.load %arg4[%c0_5, %c0_6] : memref<8x4096xi32, #tpu.memory_space<vmem>>, vector<8x4096xi32>
    tpu.vector_store %arg4[%c0_5, %c0_6], %14 {strides = array<i32>} : memref<8x4096xi32, #tpu.memory_space<vmem>>, vector<8x4096xi32>,
    return
  }
  func.func @transform_0(%arg0: i32) -> (i32, i32) {
    %c0_i32 = arith.constant 0 : i32
    %c0_i32_0 = arith.constant 0 : i32
    %c0_i32_1 = arith.constant 0 : i32
    return %c0_i32, %c0_i32_0 : i32, i32
  }
  func.func @transform_1(%arg0: i32) -> (i32, i32) {
    %c0_i32 = arith.constant 0 : i32
    %c0_i32_0 = arith.constant 0 : i32
    %c0_i32_1 = arith.constant 0 : i32
    return %c0_i32, %c0_i32_0 : i32, i32
  }
  func.func @transform_2(%arg0: i32) -> (i32, i32) {
    %c0_i32 = arith.constant 0 : i32
    %c0_i32_0 = arith.constant 0 : i32
    return %arg0, %c0_i32 : i32, i32
  }
  func.func @transform_3(%arg0: i32) -> (i32, i32) {
    %c0_i32 = arith.constant 0 : i32
    %c0_i32_0 = arith.constant 0 : i32
    return %arg0, %c0_i32 : i32, i32
  }
}

</mosaic_0001>

<llo_original>
// kernel: _one_hot_impl.1
$region0: #{_one_hot_impl.1}
  #allocation0 [shape = 'u32[]', space=smem, size = 0x4, offset = 0x4, fixed_abs, tag = 'smem constant byte address 0x4 - core index']
  #allocation1 [shape = 'u32[144,128]{1,0:T(1,128)}', space=vmem, size = 0x12000, scoped, tag = 'internal scratch']
  %s0 = inlined_call_operand.vmem [shape: bf16[128,4096], index: 0, kind: input, shape index: {}]
  %s1 = inlined_call_operand.vmem [shape: f32[1,4096], index: 1, kind: input, shape index: {}]
  %s2 = inlined_call_operand.vmem [shape: s32[8,128], index: 2, kind: input, shape index: {}]
  %s3 = inlined_call_operand.vmem [shape: s32[8,4096], index: 3, kind: output, shape index: {}]
  %s4 = sld [smem:[#allocation0]]
  $region22: #{_one_hot_impl.1} parent=0
    _
  %s6 = ssub.s32 1, %s4
  %s7 = scalar_select 0, %s6, %s4
  // Predicated region
  $region2: #{_one_hot_impl.1} parent=0 // pred_check
    _
  $region3: #{_one_hot_impl.1} parent=0 // pred_check_branch
    %9 = sbr.rel (0) target = $region5
  $region4: #{_one_hot_impl.1} parent=0 // pred_region
    _
  $region5: #{_one_hot_impl.1} parent=0 // pred_fallthru
    _
  // Predicated region
  $region6: #{_one_hot_impl.1} parent=0 // pred_check
    _
  $region7: #{_one_hot_impl.1} parent=0 // pred_check_branch
    %11 = sbr.rel (0) target = $region9
  $region8: #{_one_hot_impl.1} parent=0 // pred_region
    _
  $region9: #{_one_hot_impl.1} parent=0 // pred_fallthru
    _
  // Predicated region
  $region10: #{_one_hot_impl.1} parent=0 // pred_check
    _
  $region11: #{_one_hot_impl.1} parent=0 // pred_check_branch
    %13 = sbr.rel (0) target = $region13
  $region12: #{_one_hot_impl.1} parent=0 // pred_region
    _
  $region13: #{_one_hot_impl.1} parent=0 // pred_fallthru
    _
  %v15 = vld [vmem:[%s2] sm:$0xff]
  %vm16 = vcmp.gt.s32.totalorder %v15, 4294967295
  %v17 = vsel %vm16, %v15, 4294967295
  %vm18 = vcmp.lt.s32.totalorder %v17, 32
  %v19 = vsel %vm18, %v17, 32
  %v20 = vld [vmem:[%s0] sm:$0xff]
  %v21 = vld [vmem:[%s0 + $0x8] sm:$0xff]
  %v22 = vld [vmem:[%s0 + $0x10] sm:$0xff]
  %v23 = vld [vmem:[%s0 + $0x18] sm:$0xff]
  %v24 = vld [vmem:[%s0 + $0x20] sm:$0xff]
  %v25 = vld [vmem:[%s0 + $0x28] sm:$0xff]
  %v26 = vld [vmem:[%s0 + $0x30] sm:$0xff]
  %v27 = vld [vmem:[%s0 + $0x38] sm:$0xff]
  %v28 = vld [vmem:[%s0 + $0x40] sm:$0xff]
  %v29 = vld [vmem:[%s0 + $0x48] sm:$0xff]
  %v30 = vld [vmem:[%s0 + $0x50] sm:$0xff]
  %v31 = vld [vmem:[%s0 + $0x58] sm:$0xff]
  %v32 = vld [vmem:[%s0 + $0x60] sm:$0xff]
  %v33 = vld [vmem:[%s0 + $0x68] sm:$0xff]
  %v34 = vld [vmem:[%s0 + $0x70] sm:$0xff]
  %v35 = vld [vmem:[%s0 + $0x78] sm:$0xff]
  %v36 = vld [vmem:[%s0 + $0x80] sm:$0xff]
  %v37 = vld [vmem:[%s0 + $0x88] sm:$0xff]
  %v38 = vld [vmem:[%s0 + $0x90] sm:$0xff]
  %v39 = vld [vmem:[%s0 + $0x98] sm:$0xff]
  %v40 = vld [vmem:[%s0 + $0xa0] sm:$0xff]
  %v41 = vld [vmem:[%s0 + $0xa8] sm:$0xff]
  %v42 = vld [vmem:[%s0 + $0xb0] sm:$0xff]
  %v43 = vld [vmem:[%s0 + $0xb8] sm:$0xff]
  %v44 = vld [vmem:[%s0 + $0xc0] sm:$0xff]
  %v45 = vld [vmem:[%s0 + $0xc8] sm:$0xff]
  %v46 = vld [vmem:[%s0 + $0xd0] sm:$0xff]
  %v47 = vld [vmem:[%s0 + $0xd8] sm:$0xff]
  %v48 = vld [vmem:[%s0 + $0xe0] sm:$0xff]
  %v49 = vld [vmem:[%s0 + $0xe8] sm:$0xff]
  %v50 = vld [vmem:[%s0 + $0xf0] sm:$0xff]
  %v51 = vld [vmem:[%s0 + $0xf8] sm:$0xff]
  %v52 = vld [vmem:[%s0 + $0x100] sm:$0xff]
  %v53 = vld [vmem:[%s0 + $0x108] sm:$0xff]
  %v54 = vld [vmem:[%s0 + $0x110] sm:$0xff]
  %v55 = vld [vmem:[%s0 + $0x118] sm:$0xff]
  %v56 = vld [vmem:[%s0 + $0x120] sm:$0xff]
  %v57 = vld [vmem:[%s0 + $0x128] sm:$0xff]
  %v58 = vld [vmem:[%s0 + $0x130] sm:$0xff]
  %v59 = vld [vmem:[%s0 + $0x138] sm:$0xff]
  %v60 = vld [vmem:[%s0 + $0x140] sm:$0xff]
  %v61 = vld [vmem:[%s0 + $0x148] sm:$0xff]
  %v62 = vld [vmem:[%s0 + $0x150] sm:$0xff]
  %v63 = vld [vmem:[%s0 + $0x158] sm:$0xff]
  %v64 = vld [vmem:[%s0 + $0x160] sm:$0xff]
  %v65 = vld [vmem:[%s0 + $0x168] sm:$0xff]
  %v66 = vld [vmem:[%s0 + $0x170] sm:$0xff]
  %v67 = vld [vmem:[%s0 + $0x178] sm:$0xff]
  %v68 = vld [vmem:[%s0 + $0x180] sm:$0xff]
  %v69 = vld [vmem:[%s0 + $0x188] sm:$0xff]
  %v70 = vld [vmem:[%s0 + $0x190] sm:$0xff]
  %v71 = vld [vmem:[%s0 + $0x198] sm:$0xff]
  %v72 = vld [vmem:[%s0 + $0x1a0] sm:$0xff]
  %v73 = vld [vmem:[%s0 + $0x1a8] sm:$0xff]
  %v74 = vld [vmem:[%s0 + $0x1b0] sm:$0xff]
  %v75 = vld [vmem:[%s0 + $0x1b8] sm:$0xff]
  %v76 = vld [vmem:[%s0 + $0x1c0] sm:$0xff]
  %v77 = vld [vmem:[%s0 + $0x1c8] sm:$0xff]
  %v78 = vld [vmem:[%s0 + $0x1d0] sm:$0xff]
  %v79 = vld [vmem:[%s0 + $0x1d8] sm:$0xff]
  %v80 = vld [vmem:[%s0 + $0x1e0] sm:$0xff]
  %v81 = vld [vmem:[%s0 + $0x1e8] sm:$0xff]
  %v82 = vld [vmem:[%s0 + $0x1f0] sm:$0xff]
  %v83 = vld [vmem:[%s0 + $0x1f8] sm:$0xff]
  %v84 = vld [vmem:[%s0 + $0x200] sm:$0xff]
  %v85 = vld [vmem:[%s0 + $0x208] sm:$0xff]
  %v86 = vld [vmem:[%s0 + $0x210] sm:$0xff]
  %v87 = vld [vmem:[%s0 + $0x218] sm:$0xff]
  %v88 = vld [vmem:[%s0 + $0x220] sm:$0xff]
  %v89 = vld [vmem:[%s0 + $0x228] sm:$0xff]
  %v90 = vld [vmem:[%s0 + $0x230] sm:$0xff]
  %v91 = vld [vmem:[%s0 + $0x238] sm:$0xff]
  %v92 = vld [vmem:[%s0 + $0x240] sm:$0xff]
  %v93 = vld [vmem:[%s0 + $0x248] sm:$0xff]
  %v94 = vld [vmem:[%s0 + $0x250] sm:$0xff]
  %v95 = vld [vmem:[%s0 + $0x258] sm:$0xff]
  %v96 = vld [vmem:[%s0 + $0x260] sm:$0xff]
  %v97 = vld [vmem:[%s0 + $0x268] sm:$0xff]
  %v98 = vld [vmem:[%s0 + $0x270] sm:$0xff]
  %v99 = vld [vmem:[%s0 + $0x278] sm:$0xff]
  %v100 = vld [vmem:[%s0 + $0x280] sm:$0xff]
  %v101 = vld [vmem:[%s0 + $0x288] sm:$0xff]
  %v102 = vld [vmem:[%s0 + $0x290] sm:$0xff]
  %v103 = vld [vmem:[%s0 + $0x298] sm:$0xff]
  %v104 = vld [vmem:[%s0 + $0x2a0] sm:$0xff]
  %v105 = vld [vmem:[%s0 + $0x2a8] sm:$0xff]
  %v106 = vld [vmem:[%s0 + $0x2b0] sm:$0xff]
  %v107 = vld [vmem:[%s0 + $0x2b8] sm:$0xff]
  %v108 = vld [vmem:[%s0 + $0x2c0] sm:$0xff]
  %v109 = vld [vmem:[%s0 + $0x2c8] sm:$0xff]
  %v110 = vld [vmem:[%s0 + $0x2d0] sm:$0xff]
  %v111 = vld [vmem:[%s0 + $0x2d8] sm:$0xff]
  %v112 = vld [vmem:[%s0 + $0x2e0] sm:$0xff]
  %v113 = vld [vmem:[%s0 + $0x2e8] sm:$0xff]
  %v114 = vld [vmem:[%s0 + $0x2f0] sm:$0xff]
  %v115 = vld [vmem:[%s0 + $0x2f8] sm:$0xff]
  %v116 = vld [vmem:[%s0 + $0x300] sm:$0xff]
  %v117 = vld [vmem:[%s0 + $0x308] sm:$0xff]
  %v118 = vld [vmem:[%s0 + $0x310] sm:$0xff]
  %v119 = vld [vmem:[%s0 + $0x318] sm:$0xff]
  %v120 = vld [vmem:[%s0 + $0x320] sm:$0xff]
  %v121 = vld [vmem:[%s0 + $0x328] sm:$0xff]
  %v122 = vld [vmem:[%s0 + $0x330] sm:$0xff]
  %v123 = vld [vmem:[%s0 + $0x338] sm:$0xff]
  %v124 = vld [vmem:[%s0 + $0x340] sm:$0xff]
  %v125 = vld [vmem:[%s0 + $0x348] sm:$0xff]
  %v126 = vld [vmem:[%s0 + $0x350] sm:$0xff]
  %v127 = vld [vmem:[%s0 + $0x358] sm:$0xff]
  %v128 = vld [vmem:[%s0 + $0x360] sm:$0xff]
  %v129 = vld [vmem:[%s0 + $0x368] sm:$0xff]
  %v130 = vld [vmem:[%s0 + $0x370] sm:$0xff]
  %v131 = vld [vmem:[%s0 + $0x378] sm:$0xff]
  %v132 = vld [vmem:[%s0 + $0x380] sm:$0xff]
  %v133 = vld [vmem:[%s0 + $0x388] sm:$0xff]
  %v134 = vld [vmem:[%s0 + $0x390] sm:$0xff]
  %v135 = vld [vmem:[%s0 + $0x398] sm:$0xff]
  %v136 = vld [vmem:[%s0 + $0x3a0] sm:$0xff]
  %v137 = vld [vmem:[%s0 + $0x3a8] sm:$0xff]
  %v138 = vld [vmem:[%s0 + $0x3b0] sm:$0xff]
  %v139 = vld [vmem:[%s0 + $0x3b8] sm:$0xff]
  %v140 = vld [vmem:[%s0 + $0x3c0] sm:$0xff]
  %v141 = vld [vmem:[%s0 + $0x3c8] sm:$0xff]
  %v142 = vld [vmem:[%s0 + $0x3d0] sm:$0xff]
  %v143 = vld [vmem:[%s0 + $0x3d8] sm:$0xff]
  %v144 = vld [vmem:[%s0 + $0x3e0] sm:$0xff]
  %v145 = vld [vmem:[%s0 + $0x3e8] sm:$0xff]
  %v146 = vld [vmem:[%s0 + $0x3f0] sm:$0xff]
  %v147 = vld [vmem:[%s0 + $0x3f8] sm:$0xff]
  %v148 = vld [vmem:[%s0 + $0x400] sm:$0xff]
  %v149 = vld [vmem:[%s0 + $0x408] sm:$0xff]
  %v150 = vld [vmem:[%s0 + $0x410] sm:$0xff]
  %v151 = vld [vmem:[%s0 + $0x418] sm:$0xff]
  %v152 = vld [vmem:[%s0 + $0x420] sm:$0xff]
  %v153 = vld [vmem:[%s0 + $0x428] sm:$0xff]
  %v154 = vld [vmem:[%s0 + $0x430] sm:$0xff]
  %v155 = vld [vmem:[%s0 + $0x438] sm:$0xff]
  %v156 = vld [vmem:[%s0 + $0x440] sm:$0xff]
  %v157 = vld [vmem:[%s0 + $0x448] sm:$0xff]
  %v158 = vld [vmem:[%s0 + $0x450] sm:$0xff]
  %v159 = vld [vmem:[%s0 + $0x458] sm:$0xff]
  %v160 = vld [vmem:[%s0 + $0x460] sm:$0xff]
  %v161 = vld [vmem:[%s0 + $0x468] sm:$0xff]
  %v162 = vld [vmem:[%s0 + $0x470] sm:$0xff]
  %v163 = vld [vmem:[%s0 + $0x478] sm:$0xff]
  %v164 = vld [vmem:[%s0 + $0x480] sm:$0xff]
  %v165 = vld [vmem:[%s0 + $0x488] sm:$0xff]
  %v166 = vld [vmem:[%s0 + $0x490] sm:$0xff]
  %v167 = vld [vmem:[%s0 + $0x498] sm:$0xff]
  %v168 = vld [vmem:[%s0 + $0x4a0] sm:$0xff]
  %v169 = vld [vmem:[%s0 + $0x4a8] sm:$0xff]
  %v170 = vld [vmem:[%s0 + $0x4b0] sm:$0xff]
  %v171 = vld [vmem:[%s0 + $0x4b8] sm:$0xff]
  %v172 = vld [vmem:[%s0 + $0x4c0] sm:$0xff]
  %v173 = vld [vmem:[%s0 + $0x4c8] sm:$0xff]
  %v174 = vld [vmem:[%s0 + $0x4d0] sm:$0xff]
  %v175 = vld [vmem:[%s0 + $0x4d8] sm:$0xff]
  %v176 = vld [vmem:[%s0 + $0x4e0] sm:$0xff]
  %v177 = vld [vmem:[%s0 + $0x4e8] sm:$0xff]
  %v178 = vld [vmem:[%s0 + $0x4f0] sm:$0xff]
  %v179 = vld [vmem:[%s0 + $0x4f8] sm:$0xff]
  %v180 = vld [vmem:[%s0 + $0x500] sm:$0xff]
  %v181 = vld [vmem:[%s0 + $0x508] sm:$0xff]
  %v182 = vld [vmem:[%s0 + $0x510] sm:$0xff]
  %v183 = vld [vmem:[%s0 + $0x518] sm:$0xff]
  %v184 = vld [vmem:[%s0 + $0x520] sm:$0xff]
  %v185 = vld [vmem:[%s0 + $0x528] sm:$0xff]
  %v186 = vld [vmem:[%s0 + $0x530] sm:$0xff]
  %v187 = vld [vmem:[%s0 + $0x538] sm:$0xff]
  %v188 = vld [vmem:[%s0 + $0x540] sm:$0xff]
  %v189 = vld [vmem:[%s0 + $0x548] sm:$0xff]
  %v190 = vld [vmem:[%s0 + $0x550] sm:$0xff]
  %v191 = vld [vmem:[%s0 + $0x558] sm:$0xff]
  %v192 = vld [vmem:[%s0 + $0x560] sm:$0xff]
  %v193 = vld [vmem:[%s0 + $0x568] sm:$0xff]
  %v194 = vld [vmem:[%s0 + $0x570] sm:$0xff]
  %v195 = vld [vmem:[%s0 + $0x578] sm:$0xff]
  %v196 = vld [vmem:[%s0 + $0x580] sm:$0xff]
  %v197 = vld [vmem:[%s0 + $0x588] sm:$0xff]
  %v198 = vld [vmem:[%s0 + $0x590] sm:$0xff]
  %v199 = vld [vmem:[%s0 + $0x598] sm:$0xff]
  %v200 = vld [vmem:[%s0 + $0x5a0] sm:$0xff]
  %v201 = vld [vmem:[%s0 + $0x5a8] sm:$0xff]
  %v202 = vld [vmem:[%s0 + $0x5b0] sm:$0xff]
  %v203 = vld [vmem:[%s0 + $0x5b8] sm:$0xff]
  %v204 = vld [vmem:[%s0 + $0x5c0] sm:$0xff]
  %v205 = vld [vmem:[%s0 + $0x5c8] sm:$0xff]
  %v206 = vld [vmem:[%s0 + $0x5d0] sm:$0xff]
  %v207 = vld [vmem:[%s0 + $0x5d8] sm:$0xff]
  %v208 = vld [vmem:[%s0 + $0x5e0] sm:$0xff]
  %v209 = vld [vmem:[%s0 + $0x5e8] sm:$0xff]
  %v210 = vld [vmem:[%s0 + $0x5f0] sm:$0xff]
  %v211 = vld [vmem:[%s0 + $0x5f8] sm:$0xff]
  %v212 = vld [vmem:[%s0 + $0x600] sm:$0xff]
  %v213 = vld [vmem:[%s0 + $0x608] sm:$0xff]
  %v214 = vld [vmem:[%s0 + $0x610] sm:$0xff]
  %v215 = vld [vmem:[%s0 + $0x618] sm:$0xff]
  %v216 = vld [vmem:[%s0 + $0x620] sm:$0xff]
  %v217 = vld [vmem:[%s0 + $0x628] sm:$0xff]
  %v218 = vld [vmem:[%s0 + $0x630] sm:$0xff]
  %v219 = vld [vmem:[%s0 + $0x638] sm:$0xff]
  %v220 = vld [vmem:[%s0 + $0x640] sm:$0xff]
  %v221 = vld [vmem:[%s0 + $0x648] sm:$0xff]
  %v222 = vld [vmem:[%s0 + $0x650] sm:$0xff]
  %v223 = vld [vmem:[%s0 + $0x658] sm:$0xff]
  %v224 = vld [vmem:[%s0 + $0x660] sm:$0xff]
  %v225 = vld [vmem:[%s0 + $0x668] sm:$0xff]
  %v226 = vld [vmem:[%s0 + $0x670] sm:$0xff]
  %v227 = vld [vmem:[%s0 + $0x678] sm:$0xff]
  %v228 = vld [vmem:[%s0 + $0x680] sm:$0xff]
  %v229 = vld [vmem:[%s0 + $0x688] sm:$0xff]
  %v230 = vld [vmem:[%s0 + $0x690] sm:$0xff]
  %v231 = vld [vmem:[%s0 + $0x698] sm:$0xff]
  %v232 = vld [vmem:[%s0 + $0x6a0] sm:$0xff]
  %v233 = vld [vmem:[%s0 + $0x6a8] sm:$0xff]
  %v234 = vld [vmem:[%s0 + $0x6b0] sm:$0xff]
  %v235 = vld [vmem:[%s0 + $0x6b8] sm:$0xff]
  %v236 = vld [vmem:[%s0 + $0x6c0] sm:$0xff]
  %v237 = vld [vmem:[%s0 + $0x6c8] sm:$0xff]
  %v238 = vld [vmem:[%s0 + $0x6d0] sm:$0xff]
  %v239 = vld [vmem:[%s0 + $0x6d8] sm:$0xff]
  %v240 = vld [vmem:[%s0 + $0x6e0] sm:$0xff]
  %v241 = vld [vmem:[%s0 + $0x6e8] sm:$0xff]
  %v242 = vld [vmem:[%s0 + $0x6f0] sm:$0xff]
  %v243 = vld [vmem:[%s0 + $0x6f8] sm:$0xff]
  %v244 = vld [vmem:[%s0 + $0x700] sm:$0xff]
  %v245 = vld [vmem:[%s0 + $0x708] sm:$0xff]
  %v246 = vld [vmem:[%s0 + $0x710] sm:$0xff]
  %v247 = vld [vmem:[%s0 + $0x718] sm:$0xff]
  %v248 = vld [vmem:[%s0 + $0x720] sm:$0xff]
  %v249 = vld [vmem:[%s0 + $0x728] sm:$0xff]
  %v250 = vld [vmem:[%s0 + $0x730] sm:$0xff]
  %v251 = vld [vmem:[%s0 + $0x738] sm:$0xff]
  %v252 = vld [vmem:[%s0 + $0x740] sm:$0xff]
  %v253 = vld [vmem:[%s0 + $0x748] sm:$0xff]
  %v254 = vld [vmem:[%s0 + $0x750] sm:$0xff]
  %v255 = vld [vmem:[%s0 + $0x758] sm:$0xff]
  %v256 = vld [vmem:[%s0 + $0x760] sm:$0xff]
  %v257 = vld [vmem:[%s0 + $0x768] sm:$0xff]
  %v258 = vld [vmem:[%s0 + $0x770] sm:$0xff]
  %v259 = vld [vmem:[%s0 + $0x778] sm:$0xff]
  %v260 = vld [vmem:[%s0 + $0x780] sm:$0xff]
  %v261 = vld [vmem:[%s0 + $0x788] sm:$0xff]
  %v262 = vld [vmem:[%s0 + $0x790] sm:$0xff]
  %v263 = vld [vmem:[%s0 + $0x798] sm:$0xff]
  %v264 = vld [vmem:[%s0 + $0x7a0] sm:$0xff]
  %v265 = vld [vmem:[%s0 + $0x7a8] sm:$0xff]
  %v266 = vld [vmem:[%s0 + $0x7b0] sm:$0xff]
  %v267 = vld [vmem:[%s0 + $0x7b8] sm:$0xff]
  %v268 = vld [vmem:[%s0 + $0x7c0] sm:$0xff]
  %v269 = vld [vmem:[%s0 + $0x7c8] sm:$0xff]
  %v270 = vld [vmem:[%s0 + $0x7d0] sm:$0xff]
  %v271 = vld [vmem:[%s0 + $0x7d8] sm:$0xff]
  %v272 = vld [vmem:[%s0 + $0x7e0] sm:$0xff]
  %v273 = vld [vmem:[%s0 + $0x7e8] sm:$0xff]
  %v274 = vld [vmem:[%s0 + $0x7f0] sm:$0xff]
  %v275 = vld [vmem:[%s0 + $0x7f8] sm:$0xff]
  %v276 = vld [vmem:[%s1] sm:$0xff]
  %v277 = vld [vmem:[%s1 + $0x8] sm:$0xff]
  %v278 = vld [vmem:[%s1 + $0x10] sm:$0xff]
  %v279 = vld [vmem:[%s1 + $0x18] sm:$0xff]
  %v280 = vand.u32 %v19, 255
  %v281 = vcvt.s32.f32 %v280
  %v282 = vpack.c.bf16 %v281, %v281
  %v539 = vunpack.c.l.b16 %v20
  %v540 = vunpack.c.h.b16 %v20
  %v541 = vunpack.c.l.b16 %v21
  %v542 = vunpack.c.h.b16 %v21
  %v543 = vunpack.c.l.b16 %v22
  %v544 = vunpack.c.h.b16 %v22
  %v545 = vunpack.c.l.b16 %v23
  %v546 = vunpack.c.h.b16 %v23
  %v547 = vunpack.c.l.b16 %v24
  %v548 = vunpack.c.h.b16 %v24
  %v549 = vunpack.c.l.b16 %v25
  %v550 = vunpack.c.h.b16 %v25
  %v551 = vunpack.c.l.b16 %v26
  %v552 = vunpack.c.h.b16 %v26
  %v553 = vunpack.c.l.b16 %v27
  %v554 = vunpack.c.h.b16 %v27
  %v555 = vunpack.c.l.b16 %v28
  %v556 = vunpack.c.h.b16 %v28
  %v557 = vunpack.c.l.b16 %v29
  %v558 = vunpack.c.h.b16 %v29
  %v559 = vunpack.c.l.b16 %v30
  %v560 = vunpack.c.h.b16 %v30
  %v561 = vunpack.c.l.b16 %v31
  %v562 = vunpack.c.h.b16 %v31
  %v563 = vunpack.c.l.b16 %v32
  %v564 = vunpack.c.h.b16 %v32
  %v565 = vunpack.c.l.b16 %v33
  %v566 = vunpack.c.h.b16 %v33
  %v567 = vunpack.c.l.b16 %v34
  %v568 = vunpack.c.h.b16 %v34
  %v569 = vunpack.c.l.b16 %v35
  %v570 = vunpack.c.h.b16 %v35
  %v571 = vunpack.c.l.b16 %v36
  %v572 = vunpack.c.h.b16 %v36
  %v573 = vunpack.c.l.b16 %v37
  %v574 = vunpack.c.h.b16 %v37
  %v575 = vunpack.c.l.b16 %v38
  %v576 = vunpack.c.h.b16 %v38
  %v577 = vunpack.c.l.b16 %v39
  %v578 = vunpack.c.h.b16 %v39
  %v579 = vunpack.c.l.b16 %v40
  %v580 = vunpack.c.h.b16 %v40
  %v581 = vunpack.c.l.b16 %v41
  %v582 = vunpack.c.h.b16 %v41
  %v583 = vunpack.c.l.b16 %v42
  %v584 = vunpack.c.h.b16 %v42
  %v585 = vunpack.c.l.b16 %v43
  %v586 = vunpack.c.h.b16 %v43
  %v587 = vunpack.c.l.b16 %v44
  %v588 = vunpack.c.h.b16 %v44
  %v589 = vunpack.c.l.b16 %v45
  %v590 = vunpack.c.h.b16 %v45
  %v591 = vunpack.c.l.b16 %v46
  %v592 = vunpack.c.h.b16 %v46
  %v593 = vunpack.c.l.b16 %v47
  %v594 = vunpack.c.h.b16 %v47
  %v595 = vunpack.c.l.b16 %v48
  %v596 = vunpack.c.h.b16 %v48
  %v597 = vunpack.c.l.b16 %v49
  %v598 = vunpack.c.h.b16 %v49
  %v599 = vunpack.c.l.b16 %v50
  %v600 = vunpack.c.h.b16 %v50
  %v601 = vunpack.c.l.b16 %v51
  %v602 = vunpack.c.h.b16 %v51
  %v603 = vunpack.c.l.b16 %v52
  %v604 = vunpack.c.h.b16 %v52
  %v605 = vunpack.c.l.b16 %v53
  %v606 = vunpack.c.h.b16 %v53
  %v607 = vunpack.c.l.b16 %v54
  %v608 = vunpack.c.h.b16 %v54
  %v609 = vunpack.c.l.b16 %v55
  %v610 = vunpack.c.h.b16 %v55
  %v611 = vunpack.c.l.b16 %v56
  %v612 = vunpack.c.h.b16 %v56
  %v613 = vunpack.c.l.b16 %v57
  %v614 = vunpack.c.h.b16 %v57
  %v615 = vunpack.c.l.b16 %v58
  %v616 = vunpack.c.h.b16 %v58
  %v617 = vunpack.c.l.b16 %v59
  %v618 = vunpack.c.h.b16 %v59
  %v619 = vunpack.c.l.b16 %v60
  %v620 = vunpack.c.h.b16 %v60
  %v621 = vunpack.c.l.b16 %v61
  %v622 = vunpack.c.h.b16 %v61
  %v623 = vunpack.c.l.b16 %v62
  %v624 = vunpack.c.h.b16 %v62
  %v625 = vunpack.c.l.b16 %v63
  %v626 = vunpack.c.h.b16 %v63
  %v627 = vunpack.c.l.b16 %v64
  %v628 = vunpack.c.h.b16 %v64
  %v629 = vunpack.c.l.b16 %v65
  %v630 = vunpack.c.h.b16 %v65
  %v631 = vunpack.c.l.b16 %v66
  %v632 = vunpack.c.h.b16 %v66
  %v633 = vunpack.c.l.b16 %v67
  %v634 = vunpack.c.h.b16 %v67
  %v635 = vunpack.c.l.b16 %v68
  %v636 = vunpack.c.h.b16 %v68
  %v637 = vunpack.c.l.b16 %v69
  %v638 = vunpack.c.h.b16 %v69
  %v639 = vunpack.c.l.b16 %v70
  %v640 = vunpack.c.h.b16 %v70
  %v641 = vunpack.c.l.b16 %v71
  %v642 = vunpack.c.h.b16 %v71
  %v643 = vunpack.c.l.b16 %v72
  %v644 = vunpack.c.h.b16 %v72
  %v645 = vunpack.c.l.b16 %v73
  %v646 = vunpack.c.h.b16 %v73
  %v647 = vunpack.c.l.b16 %v74
  %v648 = vunpack.c.h.b16 %v74
  %v649 = vunpack.c.l.b16 %v75
  %v650 = vunpack.c.h.b16 %v75
  %v651 = vunpack.c.l.b16 %v76
  %v652 = vunpack.c.h.b16 %v76
  %v653 = vunpack.c.l.b16 %v77
  %v654 = vunpack.c.h.b16 %v77
  %v655 = vunpack.c.l.b16 %v78
  %v656 = vunpack.c.h.b16 %v78
  %v657 = vunpack.c.l.b16 %v79
  %v658 = vunpack.c.h.b16 %v79
  %v659 = vunpack.c.l.b16 %v80
  %v660 = vunpack.c.h.b16 %v80
  %v661 = vunpack.c.l.b16 %v81
  %v662 = vunpack.c.h.b16 %v81
  %v663 = vunpack.c.l.b16 %v82
  %v664 = vunpack.c.h.b16 %v82
  %v665 = vunpack.c.l.b16 %v83
  %v666 = vunpack.c.h.b16 %v83
  %v667 = vunpack.c.l.b16 %v84
  %v668 = vunpack.c.h.b16 %v84
  %v669 = vunpack.c.l.b16 %v85
  %v670 = vunpack.c.h.b16 %v85
  %v671 = vunpack.c.l.b16 %v86
  %v672 = vunpack.c.h.b16 %v86
  %v673 = vunpack.c.l.b16 %v87
  %v674 = vunpack.c.h.b16 %v87
  %v675 = vunpack.c.l.b16 %v88
  %v676 = vunpack.c.h.b16 %v88
  %v677 = vunpack.c.l.b16 %v89
  %v678 = vunpack.c.h.b16 %v89
  %v679 = vunpack.c.l.b16 %v90
  %v680 = vunpack.c.h.b16 %v90
  %v681 = vunpack.c.l.b16 %v91
  %v682 = vunpack.c.h.b16 %v91
  %v683 = vunpack.c.l.b16 %v92
  %v684 = vunpack.c.h.b16 %v92
  %v685 = vunpack.c.l.b16 %v93
  %v686 = vunpack.c.h.b16 %v93
  %v687 = vunpack.c.l.b16 %v94
  %v688 = vunpack.c.h.b16 %v94
  %v689 = vunpack.c.l.b16 %v95
  %v690 = vunpack.c.h.b16 %v95
  %v691 = vunpack.c.l.b16 %v96
  %v692 = vunpack.c.h.b16 %v96
  %v693 = vunpack.c.l.b16 %v97
  %v694 = vunpack.c.h.b16 %v97
  %v695 = vunpack.c.l.b16 %v98
  %v696 = vunpack.c.h.b16 %v98
  %v697 = vunpack.c.l.b16 %v99
  %v698 = vunpack.c.h.b16 %v99
  %v699 = vunpack.c.l.b16 %v100
  %v700 = vunpack.c.h.b16 %v100
  %v701 = vunpack.c.l.b16 %v101
  %v702 = vunpack.c.h.b16 %v101
  %v703 = vunpack.c.l.b16 %v102
  %v704 = vunpack.c.h.b16 %v102
  %v705 = vunpack.c.l.b16 %v103
  %v706 = vunpack.c.h.b16 %v103
  %v707 = vunpack.c.l.b16 %v104
  %v708 = vunpack.c.h.b16 %v104
  %v709 = vunpack.c.l.b16 %v105
  %v710 = vunpack.c.h.b16 %v105
  %v711 = vunpack.c.l.b16 %v106
  %v712 = vunpack.c.h.b16 %v106
  %v713 = vunpack.c.l.b16 %v107
  %v714 = vunpack.c.h.b16 %v107
  %v715 = vunpack.c.l.b16 %v108
  %v716 = vunpack.c.h.b16 %v108
  %v717 = vunpack.c.l.b16 %v109
  %v718 = vunpack.c.h.b16 %v109
  %v719 = vunpack.c.l.b16 %v110
  %v720 = vunpack.c.h.b16 %v110
  %v721 = vunpack.c.l.b16 %v111
  %v722 = vunpack.c.h.b16 %v111
  %v723 = vunpack.c.l.b16 %v112
  %v724 = vunpack.c.h.b16 %v112
  %v725 = vunpack.c.l.b16 %v113
  %v726 = vunpack.c.h.b16 %v113
  %v727 = vunpack.c.l.b16 %v114
  %v728 = vunpack.c.h.b16 %v114
  %v729 = vunpack.c.l.b16 %v115
  %v730 = vunpack.c.h.b16 %v115
  %v731 = vunpack.c.l.b16 %v116
  %v732 = vunpack.c.h.b16 %v116
  %v733 = vunpack.c.l.b16 %v117
  %v734 = vunpack.c.h.b16 %v117
  %v735 = vunpack.c.l.b16 %v118
  %v736 = vunpack.c.h.b16 %v118
  %v737 = vunpack.c.l.b16 %v119
  %v738 = vunpack.c.h.b16 %v119
  %v739 = vunpack.c.l.b16 %v120
  %v740 = vunpack.c.h.b16 %v120
  %v741 = vunpack.c.l.b16 %v121
  %v742 = vunpack.c.h.b16 %v121
  %v743 = vunpack.c.l.b16 %v122
  %v744 = vunpack.c.h.b16 %v122
  %v745 = vunpack.c.l.b16 %v123
  %v746 = vunpack.c.h.b16 %v123
  %v747 = vunpack.c.l.b16 %v124
  %v748 = vunpack.c.h.b16 %v124
  %v749 = vunpack.c.l.b16 %v125
  %v750 = vunpack.c.h.b16 %v125
  %v751 = vunpack.c.l.b16 %v126
  %v752 = vunpack.c.h.b16 %v126
  %v753 = vunpack.c.l.b16 %v127
  %v754 = vunpack.c.h.b16 %v127
  %v755 = vunpack.c.l.b16 %v128
  %v756 = vunpack.c.h.b16 %v128
  %v757 = vunpack.c.l.b16 %v129
  %v758 = vunpack.c.h.b16 %v129
  %v759 = vunpack.c.l.b16 %v130
  %v760 = vunpack.c.h.b16 %v130
  %v761 = vunpack.c.l.b16 %v131
  %v762 = vunpack.c.h.b16 %v131
  %v763 = vunpack.c.l.b16 %v132
  %v764 = vunpack.c.h.b16 %v132
  %v765 = vunpack.c.l.b16 %v133
  %v766 = vunpack.c.h.b16 %v133
  %v767 = vunpack.c.l.b16 %v134
  %v768 = vunpack.c.h.b16 %v134
  %v769 = vunpack.c.l.b16 %v135
  %v770 = vunpack.c.h.b16 %v135
  %v771 = vunpack.c.l.b16 %v136
  %v772 = vunpack.c.h.b16 %v136
  %v773 = vunpack.c.l.b16 %v137
  %v774 = vunpack.c.h.b16 %v137
  %v775 = vunpack.c.l.b16 %v138
  %v776 = vunpack.c.h.b16 %v138
  %v777 = vunpack.c.l.b16 %v139
  %v778 = vunpack.c.h.b16 %v139
  %v779 = vunpack.c.l.b16 %v140
  %v780 = vunpack.c.h.b16 %v140
  %v781 = vunpack.c.l.b16 %v141
  %v782 = vunpack.c.h.b16 %v141
  %v783 = vunpack.c.l.b16 %v142
  %v784 = vunpack.c.h.b16 %v142
  %v785 = vunpack.c.l.b16 %v143
  %v786 = vunpack.c.h.b16 %v143
  %v787 = vunpack.c.l.b16 %v144
  %v788 = vunpack.c.h.b16 %v144
  %v789 = vunpack.c.l.b16 %v145
  %v790 = vunpack.c.h.b16 %v145
  %v791 = vunpack.c.l.b16 %v146
  %v792 = vunpack.c.h.b16 %v146
  %v793 = vunpack.c.l.b16 %v147
  %v794 = vunpack.c.h.b16 %v147
  %v795 = vunpack.c.l.b16 %v148
  %v796 = vunpack.c.h.b16 %v148
  %v797 = vunpack.c.l.b16 %v149
  %v798 = vunpack.c.h.b16 %v149
  %v799 = vunpack.c.l.b16 %v150
  %v800 = vunpack.c.h.b16 %v150
  %v801 = vunpack.c.l.b16 %v151
  %v802 = vunpack.c.h.b16 %v151
  %v803 = vunpack.c.l.b16 %v152
  %v804 = vunpack.c.h.b16 %v152
  %v805 = vunpack.c.l.b16 %v153
  %v806 = vunpack.c.h.b16 %v153
  %v807 = vunpack.c.l.b16 %v154
  %v808 = vunpack.c.h.b16 %v154
  %v809 = vunpack.c.l.b16 %v155
  %v810 = vunpack.c.h.b16 %v155
  %v811 = vunpack.c.l.b16 %v156
  %v812 = vunpack.c.h.b16 %v156
  %v813 = vunpack.c.l.b16 %v157
  %v814 = vunpack.c.h.b16 %v157
  %v815 = vunpack.c.l.b16 %v158
  %v816 = vunpack.c.h.b16 %v158
  %v817 = vunpack.c.l.b16 %v159
  %v818 = vunpack.c.h.b16 %v159
  %v819 = vunpack.c.l.b16 %v160
  %v820 = vunpack.c.h.b16 %v160
  %v821 = vunpack.c.l.b16 %v161
  %v822 = vunpack.c.h.b16 %v161
  %v823 = vunpack.c.l.b16 %v162
  %v824 = vunpack.c.h.b16 %v162
  %v825 = vunpack.c.l.b16 %v163
  %v826 = vunpack.c.h.b16 %v163
  %v827 = vunpack.c.l.b16 %v164
  %v828 = vunpack.c.h.b16 %v164
  %v829 = vunpack.c.l.b16 %v165
  %v830 = vunpack.c.h.b16 %v165
  %v831 = vunpack.c.l.b16 %v166
  %v832 = vunpack.c.h.b16 %v166
  %v833 = vunpack.c.l.b16 %v167
  %v834 = vunpack.c.h.b16 %v167
  %v835 = vunpack.c.l.b16 %v168
  %v836 = vunpack.c.h.b16 %v168
  %v837 = vunpack.c.l.b16 %v169
  %v838 = vunpack.c.h.b16 %v169
  %v839 = vunpack.c.l.b16 %v170
  %v840 = vunpack.c.h.b16 %v170
  %v841 = vunpack.c.l.b16 %v171
  %v842 = vunpack.c.h.b16 %v171
  %v843 = vunpack.c.l.b16 %v172
  %v844 = vunpack.c.h.b16 %v172
  %v845 = vunpack.c.l.b16 %v173
  %v846 = vunpack.c.h.b16 %v173
  %v847 = vunpack.c.l.b16 %v174
  %v848 = vunpack.c.h.b16 %v174
  %v849 = vunpack.c.l.b16 %v175
  %v850 = vunpack.c.h.b16 %v175
  %v851 = vunpack.c.l.b16 %v176
  %v852 = vunpack.c.h.b16 %v176
  %v853 = vunpack.c.l.b16 %v177
  %v854 = vunpack.c.h.b16 %v177
  %v855 = vunpack.c.l.b16 %v178
  %v856 = vunpack.c.h.b16 %v178
  %v857 = vunpack.c.l.b16 %v179
  %v858 = vunpack.c.h.b16 %v179
  %v859 = vunpack.c.l.b16 %v180
  %v860 = vunpack.c.h.b16 %v180
  %v861 = vunpack.c.l.b16 %v181
  %v862 = vunpack.c.h.b16 %v181
  %v863 = vunpack.c.l.b16 %v182
  %v864 = vunpack.c.h.b16 %v182
  %v865 = vunpack.c.l.b16 %v183
  %v866 = vunpack.c.h.b16 %v183
  %v867 = vunpack.c.l.b16 %v184
  %v868 = vunpack.c.h.b16 %v184
  %v869 = vunpack.c.l.b16 %v185
  %v870 = vunpack.c.h.b16 %v185
  %v871 = vunpack.c.l.b16 %v186
  %v872 = vunpack.c.h.b16 %v186
  %v873 = vunpack.c.l.b16 %v187
  %v874 = vunpack.c.h.b16 %v187
  %v875 = vunpack.c.l.b16 %v188
  %v876 = vunpack.c.h.b16 %v188
  %v877 = vunpack.c.l.b16 %v189
  %v878 = vunpack.c.h.b16 %v189
  %v879 = vunpack.c.l.b16 %v190
  %v880 = vunpack.c.h.b16 %v190
  %v881 = vunpack.c.l.b16 %v191
  %v882 = vunpack.c.h.b16 %v191
  %v883 = vunpack.c.l.b16 %v192
  %v884 = vunpack.c.h.b16 %v192
  %v885 = vunpack.c.l.b16 %v193
  %v886 = vunpack.c.h.b16 %v193
  %v887 = vunpack.c.l.b16 %v194
  %v888 = vunpack.c.h.b16 %v194
  %v889 = vunpack.c.l.b16 %v195
  %v890 = vunpack.c.h.b16 %v195
  %v891 = vunpack.c.l.b16 %v196
  %v892 = vunpack.c.h.b16 %v196
  %v893 = vunpack.c.l.b16 %v197
  %v894 = vunpack.c.h.b16 %v197
  %v895 = vunpack.c.l.b16 %v198
  %v896 = vunpack.c.h.b16 %v198
  %v897 = vunpack.c.l.b16 %v199
  %v898 = vunpack.c.h.b16 %v199
  %v899 = vunpack.c.l.b16 %v200
  %v900 = vunpack.c.h.b16 %v200
  %v901 = vunpack.c.l.b16 %v201
  %v902 = vunpack.c.h.b16 %v201
  %v903 = vunpack.c.l.b16 %v202
  %v904 = vunpack.c.h.b16 %v202
  %v905 = vunpack.c.l.b16 %v203
  %v906 = vunpack.c.h.b16 %v203
  %v907 = vunpack.c.l.b16 %v204
  %v908 = vunpack.c.h.b16 %v204
  %v909 = vunpack.c.l.b16 %v205
  %v910 = vunpack.c.h.b16 %v205
  %v911 = vunpack.c.l.b16 %v206
  %v912 = vunpack.c.h.b16 %v206
  %v913 = vunpack.c.l.b16 %v207
  %v914 = vunpack.c.h.b16 %v207
  %v915 = vunpack.c.l.b16 %v208
  %v916 = vunpack.c.h.b16 %v208
  %v917 = vunpack.c.l.b16 %v209
  %v918 = vunpack.c.h.b16 %v209
  %v919 = vunpack.c.l.b16 %v210
  %v920 = vunpack.c.h.b16 %v210
  %v921 = vunpack.c.l.b16 %v211
  %v922 = vunpack.c.h.b16 %v211
  %v923 = vunpack.c.l.b16 %v212
  %v924 = vunpack.c.h.b16 %v212
  %v925 = vunpack.c.l.b16 %v213
  %v926 = vunpack.c.h.b16 %v213
  %v927 = vunpack.c.l.b16 %v214
  %v928 = vunpack.c.h.b16 %v214
  %v929 = vunpack.c.l.b16 %v215
  %v930 = vunpack.c.h.b16 %v215
  %v931 = vunpack.c.l.b16 %v216
  %v932 = vunpack.c.h.b16 %v216
  %v933 = vunpack.c.l.b16 %v217
  %v934 = vunpack.c.h.b16 %v217
  %v935 = vunpack.c.l.b16 %v218
  %v936 = vunpack.c.h.b16 %v218
  %v937 = vunpack.c.l.b16 %v219
  %v938 = vunpack.c.h.b16 %v219
  %v939 = vunpack.c.l.b16 %v220
  %v940 = vunpack.c.h.b16 %v220
  %v941 = vunpack.c.l.b16 %v221
  %v942 = vunpack.c.h.b16 %v221
  %v943 = vunpack.c.l.b16 %v222
  %v944 = vunpack.c.h.b16 %v222
  %v945 = vunpack.c.l.b16 %v223
  %v946 = vunpack.c.h.b16 %v223
  %v947 = vunpack.c.l.b16 %v224
  %v948 = vunpack.c.h.b16 %v224
  %v949 = vunpack.c.l.b16 %v225
  %v950 = vunpack.c.h.b16 %v225
  %v951 = vunpack.c.l.b16 %v226
  %v952 = vunpack.c.h.b16 %v226
  %v953 = vunpack.c.l.b16 %v227
  %v954 = vunpack.c.h.b16 %v227
  %v955 = vunpack.c.l.b16 %v228
  %v956 = vunpack.c.h.b16 %v228
  %v957 = vunpack.c.l.b16 %v229
  %v958 = vunpack.c.h.b16 %v229
  %v959 = vunpack.c.l.b16 %v230
  %v960 = vunpack.c.h.b16 %v230
  %v961 = vunpack.c.l.b16 %v231
  %v962 = vunpack.c.h.b16 %v231
  %v963 = vunpack.c.l.b16 %v232
  %v964 = vunpack.c.h.b16 %v232
  %v965 = vunpack.c.l.b16 %v233
  %v966 = vunpack.c.h.b16 %v233
  %v967 = vunpack.c.l.b16 %v234
  %v968 = vunpack.c.h.b16 %v234
  %v969 = vunpack.c.l.b16 %v235
  %v970 = vunpack.c.h.b16 %v235
  %v971 = vunpack.c.l.b16 %v236
  %v972 = vunpack.c.h.b16 %v236
  %v973 = vunpack.c.l.b16 %v237
  %v974 = vunpack.c.h.b16 %v237
  %v975 = vunpack.c.l.b16 %v238
  %v976 = vunpack.c.h.b16 %v238
  %v977 = vunpack.c.l.b16 %v239
  %v978 = vunpack.c.h.b16 %v239
  %v979 = vunpack.c.l.b16 %v240
  %v980 = vunpack.c.h.b16 %v240
  %v981 = vunpack.c.l.b16 %v241
  %v982 = vunpack.c.h.b16 %v241
  %v983 = vunpack.c.l.b16 %v242
  %v984 = vunpack.c.h.b16 %v242
  %v985 = vunpack.c.l.b16 %v243
  %v986 = vunpack.c.h.b16 %v243
  %v987 = vunpack.c.l.b16 %v244
  %v988 = vunpack.c.h.b16 %v244
  %v989 = vunpack.c.l.b16 %v245
  %v990 = vunpack.c.h.b16 %v245
  %v991 = vunpack.c.l.b16 %v246
  %v992 = vunpack.c.h.b16 %v246
  %v993 = vunpack.c.l.b16 %v247
  %v994 = vunpack.c.h.b16 %v247
  %v995 = vunpack.c.l.b16 %v248
  %v996 = vunpack.c.h.b16 %v248
  %v997 = vunpack.c.l.b16 %v249
  %v998 = vunpack.c.h.b16 %v249
  %v999 = vunpack.c.l.b16 %v250
  %v1000 = vunpack.c.h.b16 %v250
  %v1001 = vunpack.c.l.b16 %v251
  %v1002 = vunpack.c.h.b16 %v251
  %v1003 = vunpack.c.l.b16 %v252
  %v1004 = vunpack.c.h.b16 %v252
  %v1005 = vunpack.c.l.b16 %v253
  %v1006 = vunpack.c.h.b16 %v253
  %v1007 = vunpack.c.l.b16 %v254
  %v1008 = vunpack.c.h.b16 %v254
  %v1009 = vunpack.c.l.b16 %v255
  %v1010 = vunpack.c.h.b16 %v255
  %v1011 = vunpack.c.l.b16 %v256
  %v1012 = vunpack.c.h.b16 %v256
  %v1013 = vunpack.c.l.b16 %v257
  %v1014 = vunpack.c.h.b16 %v257
  %v1015 = vunpack.c.l.b16 %v258
  %v1016 = vunpack.c.h.b16 %v258
  %v1017 = vunpack.c.l.b16 %v259
  %v1018 = vunpack.c.h.b16 %v259
  %v1019 = vunpack.c.l.b16 %v260
  %v1020 = vunpack.c.h.b16 %v260
  %v1021 = vunpack.c.l.b16 %v261
  %v1022 = vunpack.c.h.b16 %v261
  %v1023 = vunpack.c.l.b16 %v262
  %v1024 = vunpack.c.h.b16 %v262
  %v1025 = vunpack.c.l.b16 %v263
  %v1026 = vunpack.c.h.b16 %v263
  %v1027 = vunpack.c.l.b16 %v264
  %v1028 = vunpack.c.h.b16 %v264
  %v1029 = vunpack.c.l.b16 %v265
  %v1030 = vunpack.c.h.b16 %v265
  %v1031 = vunpack.c.l.b16 %v266
  %v1032 = vunpack.c.h.b16 %v266
  %v1033 = vunpack.c.l.b16 %v267
  %v1034 = vunpack.c.h.b16 %v267
  %v1035 = vunpack.c.l.b16 %v268
  %v1036 = vunpack.c.h.b16 %v268
  %v1037 = vunpack.c.l.b16 %v269
  %v1038 = vunpack.c.h.b16 %v269
  %v1039 = vunpack.c.l.b16 %v270
  %v1040 = vunpack.c.h.b16 %v270
  %v1041 = vunpack.c.l.b16 %v271
  %v1042 = vunpack.c.h.b16 %v271
  %v1043 = vunpack.c.l.b16 %v272
  %v1044 = vunpack.c.h.b16 %v272
  %v1045 = vunpack.c.l.b16 %v273
  %v1046 = vunpack.c.h.b16 %v273
  %v1047 = vunpack.c.l.b16 %v274
  %v1048 = vunpack.c.h.b16 %v274
  %v1049 = vunpack.c.l.b16 %v275
  %v1050 = vunpack.c.h.b16 %v275
  %v1051 = vpack.c.b16 %v571, %v539
  %v1052 = vpack.c.b16 %v572, %v540
  %v1053 = vpack.c.b16 %v573, %v541
  %v1054 = vpack.c.b16 %v574, %v542
  %v1055 = vpack.c.b16 %v575, %v543
  %v1056 = vpack.c.b16 %v576, %v544
  %v1057 = vpack.c.b16 %v577, %v545
  %v1058 = vpack.c.b16 %v578, %v546
  %v1059 = vpack.c.b16 %v579, %v547
  %v1060 = vpack.c.b16 %v580, %v548
  %v1061 = vpack.c.b16 %v581, %v549
  %v1062 = vpack.c.b16 %v582, %v550
  %v1063 = vpack.c.b16 %v583, %v551
  %v1064 = vpack.c.b16 %v584, %v552
  %v1065 = vpack.c.b16 %v585, %v553
  %v1066 = vpack.c.b16 %v586, %v554
  %v1067 = vpack.c.b16 %v587, %v555
  %v1068 = vpack.c.b16 %v588, %v556
  %v1069 = vpack.c.b16 %v589, %v557
  %v1070 = vpack.c.b16 %v590, %v558
  %v1071 = vpack.c.b16 %v591, %v559
  %v1072 = vpack.c.b16 %v592, %v560
  %v1073 = vpack.c.b16 %v593, %v561
  %v1074 = vpack.c.b16 %v594, %v562
  %v1075 = vpack.c.b16 %v595, %v563
  %v1076 = vpack.c.b16 %v596, %v564
  %v1077 = vpack.c.b16 %v597, %v565
  %v1078 = vpack.c.b16 %v598, %v566
  %v1079 = vpack.c.b16 %v599, %v567
  %v1080 = vpack.c.b16 %v600, %v568
  %v1081 = vpack.c.b16 %v601, %v569
  %v1082 = vpack.c.b16 %v602, %v570
  %v1083 = vpack.c.b16 %v635, %v603
  %v1084 = vpack.c.b16 %v636, %v604
  %v1085 = vpack.c.b16 %v637, %v605
  %v1086 = vpack.c.b16 %v638, %v606
  %v1087 = vpack.c.b16 %v639, %v607
  %v1088 = vpack.c.b16 %v640, %v608
  %v1089 = vpack.c.b16 %v641, %v609
  %v1090 = vpack.c.b16 %v642, %v610
  %v1091 = vpack.c.b16 %v643, %v611
  %v1092 = vpack.c.b16 %v644, %v612
  %v1093 = vpack.c.b16 %v645, %v613
  %v1094 = vpack.c.b16 %v646, %v614
  %v1095 = vpack.c.b16 %v647, %v615
  %v1096 = vpack.c.b16 %v648, %v616
  %v1097 = vpack.c.b16 %v649, %v617
  %v1098 = vpack.c.b16 %v650, %v618
  %v1099 = vpack.c.b16 %v651, %v619
  %v1100 = vpack.c.b16 %v652, %v620
  %v1101 = vpack.c.b16 %v653, %v621
  %v1102 = vpack.c.b16 %v654, %v622
  %v1103 = vpack.c.b16 %v655, %v623
  %v1104 = vpack.c.b16 %v656, %v624
  %v1105 = vpack.c.b16 %v657, %v625
  %v1106 = vpack.c.b16 %v658, %v626
  %v1107 = vpack.c.b16 %v659, %v627
  %v1108 = vpack.c.b16 %v660, %v628
  %v1109 = vpack.c.b16 %v661, %v629
  %v1110 = vpack.c.b16 %v662, %v630
  %v1111 = vpack.c.b16 %v663, %v631
  %v1112 = vpack.c.b16 %v664, %v632
  %v1113 = vpack.c.b16 %v665, %v633
  %v1114 = vpack.c.b16 %v666, %v634
  %v1115 = vpack.c.b16 %v699, %v667
  %v1116 = vpack.c.b16 %v700, %v668
  %v1117 = vpack.c.b16 %v701, %v669
  %v1118 = vpack.c.b16 %v702, %v670
  %v1119 = vpack.c.b16 %v703, %v671
  %v1120 = vpack.c.b16 %v704, %v672
  %v1121 = vpack.c.b16 %v705, %v673
  %v1122 = vpack.c.b16 %v706, %v674
  %v1123 = vpack.c.b16 %v707, %v675
  %v1124 = vpack.c.b16 %v708, %v676
  %v1125 = vpack.c.b16 %v709, %v677
  %v1126 = vpack.c.b16 %v710, %v678
  %v1127 = vpack.c.b16 %v711, %v679
  %v1128 = vpack.c.b16 %v712, %v680
  %v1129 = vpack.c.b16 %v713, %v681
  %v1130 = vpack.c.b16 %v714, %v682
  %v1131 = vpack.c.b16 %v715, %v683
  %v1132 = vpack.c.b16 %v716, %v684
  %v1133 = vpack.c.b16 %v717, %v685
  %v1134 = vpack.c.b16 %v718, %v686
  %v1135 = vpack.c.b16 %v719, %v687
  %v1136 = vpack.c.b16 %v720, %v688
  %v1137 = vpack.c.b16 %v721, %v689
  %v1138 = vpack.c.b16 %v722, %v690
  %v1139 = vpack.c.b16 %v723, %v691
  %v1140 = vpack.c.b16 %v724, %v692
  %v1141 = vpack.c.b16 %v725, %v693
  %v1142 = vpack.c.b16 %v726, %v694
  %v1143 = vpack.c.b16 %v727, %v695
  %v1144 = vpack.c.b16 %v728, %v696
  %v1145 = vpack.c.b16 %v729, %v697
  %v1146 = vpack.c.b16 %v730, %v698
  %v1147 = vpack.c.b16 %v763, %v731
  %v1148 = vpack.c.b16 %v764, %v732
  %v1149 = vpack.c.b16 %v765, %v733
  %v1150 = vpack.c.b16 %v766, %v734
  %v1151 = vpack.c.b16 %v767, %v735
  %v1152 = vpack.c.b16 %v768, %v736
  %v1153 = vpack.c.b16 %v769, %v737
  %v1154 = vpack.c.b16 %v770, %v738
  %v1155 = vpack.c.b16 %v771, %v739
  %v1156 = vpack.c.b16 %v772, %v740
  %v1157 = vpack.c.b16 %v773, %v741
  %v1158 = vpack.c.b16 %v774, %v742
  %v1159 = vpack.c.b16 %v775, %v743
  %v1160 = vpack.c.b16 %v776, %v744
  %v1161 = vpack.c.b16 %v777, %v745
  %v1162 = vpack.c.b16 %v778, %v746
  %v1163 = vpack.c.b16 %v779, %v747
  %v1164 = vpack.c.b16 %v780, %v748
  %v1165 = vpack.c.b16 %v781, %v749
  %v1166 = vpack.c.b16 %v782, %v750
  %v1167 = vpack.c.b16 %v783, %v751
  %v1168 = vpack.c.b16 %v784, %v752
  %v1169 = vpack.c.b16 %v785, %v753
  %v1170 = vpack.c.b16 %v786, %v754
  %v1171 = vpack.c.b16 %v787, %v755
  %v1172 = vpack.c.b16 %v788, %v756
  %v1173 = vpack.c.b16 %v789, %v757
  %v1174 = vpack.c.b16 %v790, %v758
  %v1175 = vpack.c.b16 %v791, %v759
  %v1176 = vpack.c.b16 %v792, %v760
  %v1177 = vpack.c.b16 %v793, %v761
  %v1178 = vpack.c.b16 %v794, %v762
  %v1179 = vpack.c.b16 %v827, %v795
  %v1180 = vpack.c.b16 %v828, %v796
  %v1181 = vpack.c.b16 %v829, %v797
  %v1182 = vpack.c.b16 %v830, %v798
  %v1183 = vpack.c.b16 %v831, %v799
  %v1184 = vpack.c.b16 %v832, %v800
  %v1185 = vpack.c.b16 %v833, %v801
  %v1186 = vpack.c.b16 %v834, %v802
  %v1187 = vpack.c.b16 %v835, %v803
  %v1188 = vpack.c.b16 %v836, %v804
  %v1189 = vpack.c.b16 %v837, %v805
  %v1190 = vpack.c.b16 %v838, %v806
  %v1191 = vpack.c.b16 %v839, %v807
  %v1192 = vpack.c.b16 %v840, %v808
  %v1193 = vpack.c.b16 %v841, %v809
  %v1194 = vpack.c.b16 %v842, %v810
  %v1195 = vpack.c.b16 %v843, %v811
  %v1196 = vpack.c.b16 %v844, %v812
  %v1197 = vpack.c.b16 %v845, %v813
  %v1198 = vpack.c.b16 %v846, %v814
  %v1199 = vpack.c.b16 %v847, %v815
  %v1200 = vpack.c.b16 %v848, %v816
  %v1201 = vpack.c.b16 %v849, %v817
  %v1202 = vpack.c.b16 %v850, %v818
  %v1203 = vpack.c.b16 %v851, %v819
  %v1204 = vpack.c.b16 %v852, %v820
  %v1205 = vpack.c.b16 %v853, %v821
  %v1206 = vpack.c.b16 %v854, %v822
  %v1207 = vpack.c.b16 %v855, %v823
  %v1208 = vpack.c.b16 %v856, %v824
  %v1209 = vpack.c.b16 %v857, %v825
  %v1210 = vpack.c.b16 %v858, %v826
  %v1211 = vpack.c.b16 %v891, %v859
  %v1212 = vpack.c.b16 %v892, %v860
  %v1213 = vpack.c.b16 %v893, %v861
  %v1214 = vpack.c.b16 %v894, %v862
  %v1215 = vpack.c.b16 %v895, %v863
  %v1216 = vpack.c.b16 %v896, %v864
  %v1217 = vpack.c.b16 %v897, %v865
  %v1218 = vpack.c.b16 %v898, %v866
  %v1219 = vpack.c.b16 %v899, %v867
  %v1220 = vpack.c.b16 %v900, %v868
  %v1221 = vpack.c.b16 %v901, %v869
  %v1222 = vpack.c.b16 %v902, %v870
  %v1223 = vpack.c.b16 %v903, %v871
  %v1224 = vpack.c.b16 %v904, %v872
  %v1225 = vpack.c.b16 %v905, %v873
  %v1226 = vpack.c.b16 %v906, %v874
  %v1227 = vpack.c.b16 %v907, %v875
  %v1228 = vpack.c.b16 %v908, %v876
  %v1229 = vpack.c.b16 %v909, %v877
  %v1230 = vpack.c.b16 %v910, %v878
  %v1231 = vpack.c.b16 %v911, %v879
  %v1232 = vpack.c.b16 %v912, %v880
  %v1233 = vpack.c.b16 %v913, %v881
  %v1234 = vpack.c.b16 %v914, %v882
  %v1235 = vpack.c.b16 %v915, %v883
  %v1236 = vpack.c.b16 %v916, %v884
  %v1237 = vpack.c.b16 %v917, %v885
  %v1238 = vpack.c.b16 %v918, %v886
  %v1239 = vpack.c.b16 %v919, %v887
  %v1240 = vpack.c.b16 %v920, %v888
  %v1241 = vpack.c.b16 %v921, %v889
  %v1242 = vpack.c.b16 %v922, %v890
  %v1243 = vpack.c.b16 %v955, %v923
  %v1244 = vpack.c.b16 %v956, %v924
  %v1245 = vpack.c.b16 %v957, %v925
  %v1246 = vpack.c.b16 %v958, %v926
  %v1247 = vpack.c.b16 %v959, %v927
  %v1248 = vpack.c.b16 %v960, %v928
  %v1249 = vpack.c.b16 %v961, %v929
  %v1250 = vpack.c.b16 %v962, %v930
  %v1251 = vpack.c.b16 %v963, %v931
  %v1252 = vpack.c.b16 %v964, %v932
  %v1253 = vpack.c.b16 %v965, %v933
  %v1254 = vpack.c.b16 %v966, %v934
  %v1255 = vpack.c.b16 %v967, %v935
  %v1256 = vpack.c.b16 %v968, %v936
  %v1257 = vpack.c.b16 %v969, %v937
  %v1258 = vpack.c.b16 %v970, %v938
  %v1259 = vpack.c.b16 %v971, %v939
  %v1260 = vpack.c.b16 %v972, %v940
  %v1261 = vpack.c.b16 %v973, %v941
  %v1262 = vpack.c.b16 %v974, %v942
  %v1263 = vpack.c.b16 %v975, %v943
  %v1264 = vpack.c.b16 %v976, %v944
  %v1265 = vpack.c.b16 %v977, %v945
  %v1266 = vpack.c.b16 %v978, %v946
  %v1267 = vpack.c.b16 %v979, %v947
  %v1268 = vpack.c.b16 %v980, %v948
  %v1269 = vpack.c.b16 %v981, %v949
  %v1270 = vpack.c.b16 %v982, %v950
  %v1271 = vpack.c.b16 %v983, %v951
  %v1272 = vpack.c.b16 %v984, %v952
  %v1273 = vpack.c.b16 %v985, %v953
  %v1274 = vpack.c.b16 %v986, %v954
  %v1275 = vpack.c.b16 %v1019, %v987
  %v1276 = vpack.c.b16 %v1020, %v988
  %v1277 = vpack.c.b16 %v1021, %v989
  %v1278 = vpack.c.b16 %v1022, %v990
  %v1279 = vpack.c.b16 %v1023, %v991
  %v1280 = vpack.c.b16 %v1024, %v992
  %v1281 = vpack.c.b16 %v1025, %v993
  %v1282 = vpack.c.b16 %v1026, %v994
  %v1283 = vpack.c.b16 %v1027, %v995
  %v1284 = vpack.c.b16 %v1028, %v996
  %v1285 = vpack.c.b16 %v1029, %v997
  %v1286 = vpack.c.b16 %v1030, %v998
  %v1287 = vpack.c.b16 %v1031, %v999
  %v1288 = vpack.c.b16 %v1032, %v1000
  %v1289 = vpack.c.b16 %v1033, %v1001
  %v1290 = vpack.c.b16 %v1034, %v1002
  %v1291 = vpack.c.b16 %v1035, %v1003
  %v1292 = vpack.c.b16 %v1036, %v1004
  %v1293 = vpack.c.b16 %v1037, %v1005
  %v1294 = vpack.c.b16 %v1038, %v1006
  %v1295 = vpack.c.b16 %v1039, %v1007
  %v1296 = vpack.c.b16 %v1040, %v1008
  %v1297 = vpack.c.b16 %v1041, %v1009
  %v1298 = vpack.c.b16 %v1042, %v1010
  %v1299 = vpack.c.b16 %v1043, %v1011
  %v1300 = vpack.c.b16 %v1044, %v1012
  %v1301 = vpack.c.b16 %v1045, %v1013
  %v1302 = vpack.c.b16 %v1046, %v1014
  %v1303 = vpack.c.b16 %v1047, %v1015
  %v1304 = vpack.c.b16 %v1048, %v1016
  %v1305 = vpack.c.b16 %v1049, %v1017
  %v1306 = vpack.c.b16 %v1050, %v1018
  %1563 = vmatprep.subr.bf16.mxu0 %v1052
  %1564 = vmatpush1.bf16.msra.mxu0 %v1051
  %1565 = vmatprep.subr.bf16.mxu0 %v1084
  %1566 = vmatpush1.bf16.msra.mxu0 %v1083
  %1567 = vmatprep.subr.bf16.mxu0 %v1116
  %1568 = vmatpush1.bf16.msra.mxu0 %v1115
  %1569 = vmatprep.subr.bf16.mxu0 %v1148
  %1570 = vmatpush1.bf16.msra.mxu0 %v1147
  %1571 = vmatprep.subr.bf16.mxu0 %v1180
  %1572 = vmatpush1.bf16.msra.mxu0 %v1179
  %1573 = vmatprep.subr.bf16.mxu0 %v1212
  %1574 = vmatpush1.bf16.msra.mxu0 %v1211
  %1575 = vmatprep.subr.bf16.mxu0 %v1244
  %1576 = vmatpush1.bf16.msra.mxu0 %v1243
  %1577 = vmatprep.subr.bf16.mxu0 %v1276
  %1578 = vmatpush1.bf16.msra.mxu0 %v1275
  %1579 = vmatprep.subr.bf16.mxu0 0
  %1580 = vmatpush1.bf16.msra.mxu0 0
  %1581 = vmatprep.subr.bf16.mxu0 0
  %1582 = vmatpush1.bf16.msra.mxu0 0
  %1583 = vmatprep.subr.bf16.mxu0 0
  %1584 = vmatpush1.bf16.msra.mxu0 0
  %1585 = vmatprep.subr.bf16.mxu0 0
  %1586 = vmatpush1.bf16.msra.mxu0 0
  %1587 = vmatprep.subr.bf16.mxu0 0
  %1588 = vmatpush1.bf16.msra.mxu0 0
  %1589 = vmatprep.subr.bf16.mxu0 0
  %1590 = vmatpush1.bf16.msra.mxu0 0
  %1591 = vmatprep.subr.bf16.mxu0 0
  %1592 = vmatpush1.bf16.msra.mxu0 0
  %1593 = vmatprep.subr.bf16.mxu0 0
  %1594 = vmatpush1.bf16.msra.mxu0 0
  %1595 = vmatprep.mubr.bf16.mxu0 0
  %1596 = vmatmul.mubr.bf16.gmra.mrb[0].mxu0 %v282
  %v1597 = vpop.f32.mrb[0].mxu0
  %v1598 = vadd.f32 0.0, %v1597
  %v1599 = vpop.f32.mrb[0].mxu0
  %v1600 = vadd.f32 0.0, %v1599
  %v1601 = vpop.f32.mrb[0].mxu0
  %v1602 = vpop.f32.mrb[0].mxu0
  %1603 = vdwg.mxu0
  %1604 = vmatprep.subr.bf16.mxu0 %v1054
  %1605 = vmatpush1.bf16.msra.mxu0 %v1053
  %1606 = vmatprep.subr.bf16.mxu0 %v1086
  %1607 = vmatpush1.bf16.msra.mxu0 %v1085
  %1608 = vmatprep.subr.bf16.mxu0 %v1118
  %1609 = vmatpush1.bf16.msra.mxu0 %v1117
  %1610 = vmatprep.subr.bf16.mxu0 %v1150
  %1611 = vmatpush1.bf16.msra.mxu0 %v1149
  %1612 = vmatprep.subr.bf16.mxu0 %v1182
  %1613 = vmatpush1.bf16.msra.mxu0 %v1181
  %1614 = vmatprep.subr.bf16.mxu0 %v1214
  %1615 = vmatpush1.bf16.msra.mxu0 %v1213
  %1616 = vmatprep.subr.bf16.mxu0 %v1246
  %1617 = vmatpush1.bf16.msra.mxu0 %v1245
  %1618 = vmatprep.subr.bf16.mxu0 %v1278
  %1619 = vmatpush1.bf16.msra.mxu0 %v1277
  %1620 = vmatprep.subr.bf16.mxu0 0
  %1621 = vmatpush1.bf16.msra.mxu0 0
  %1622 = vmatprep.subr.bf16.mxu0 0
  %1623 = vmatpush1.bf16.msra.mxu0 0
  %1624 = vmatprep.subr.bf16.mxu0 0
  %1625 = vmatpush1.bf16.msra.mxu0 0
  %1626 = vmatprep.subr.bf16.mxu0 0
  %1627 = vmatpush1.bf16.msra.mxu0 0
  %1628 = vmatprep.subr.bf16.mxu0 0
  %1629 = vmatpush1.bf16.msra.mxu0 0
  %1630 = vmatprep.subr.bf16.mxu0 0
  %1631 = vmatpush1.bf16.msra.mxu0 0
  %1632 = vmatprep.subr.bf16.mxu0 0
  %1633 = vmatpush1.bf16.msra.mxu0 0
  %1634 = vmatprep.subr.bf16.mxu0 0
  %1635 = vmatpush1.bf16.msra.mxu0 0
  %1636 = vmatprep.mubr.bf16.mxu0 0
  %1637 = vmatmul.mubr.bf16.gmra.mrb[0].mxu0 %v282
  %v1638 = vpop.f32.mrb[0].mxu0
  %v1639 = vadd.f32 0.0, %v1638
  %v1640 = vpop.f32.mrb[0].mxu0
  %v1641 = vadd.f32 0.0, %v1640
  %v1642 = vpop.f32.mrb[0].mxu0
  %v1643 = vpop.f32.mrb[0].mxu0
  %1644 = vdwg.mxu0
  %1645 = vmatprep.subr.bf16.mxu0 %v1056
  %1646 = vmatpush1.bf16.msra.mxu0 %v1055
  %1647 = vmatprep.subr.bf16.mxu0 %v1088
  %1648 = vmatpush1.bf16.msra.mxu0 %v1087
  %1649 = vmatprep.subr.bf16.mxu0 %v1120
  %1650 = vmatpush1.bf16.msra.mxu0 %v1119
  %1651 = vmatprep.subr.bf16.mxu0 %v1152
  %1652 = vmatpush1.bf16.msra.mxu0 %v1151
  %1653 = vmatprep.subr.bf16.mxu0 %v1184
  %1654 = vmatpush1.bf16.msra.mxu0 %v1183
  %1655 = vmatprep.subr.bf16.mxu0 %v1216
  %1656 = vmatpush1.bf16.msra.mxu0 %v1215
  %1657 = vmatprep.subr.bf16.mxu0 %v1248
  %1658 = vmatpush1.bf16.msra.mxu0 %v1247
  %1659 = vmatprep.subr.bf16.mxu0 %v1280
  %1660 = vmatpush1.bf16.msra.mxu0 %v1279
  %1661 = vmatprep.subr.bf16.mxu0 0
  %1662 = vmatpush1.bf16.msra.mxu0 0
  %1663 = vmatprep.subr.bf16.mxu0 0
  %1664 = vmatpush1.bf16.msra.mxu0 0
  %1665 = vmatprep.subr.bf16.mxu0 0
  %1666 = vmatpush1.bf16.msra.mxu0 0
  %1667 = vmatprep.subr.bf16.mxu0 0
  %1668 = vmatpush1.bf16.msra.mxu0 0
  %1669 = vmatprep.subr.bf16.mxu0 0
  %1670 = vmatpush1.bf16.msra.mxu0 0
  %1671 = vmatprep.subr.bf16.mxu0 0
  %1672 = vmatpush1.bf16.msra.mxu0 0
  %1673 = vmatprep.subr.bf16.mxu0 0
  %1674 = vmatpush1.bf16.msra.mxu0 0
  %1675 = vmatprep.subr.bf16.mxu0 0
  %1676 = vmatpush1.bf16.msra.mxu0 0
  %1677 = vmatprep.mubr.bf16.mxu0 0
  %1678 = vmatmul.mubr.bf16.gmra.mrb[0].mxu0 %v282
  %v1679 = vpop.f32.mrb[0].mxu0
  %v1680 = vadd.f32 0.0, %v1679
  %v1681 = vpop.f32.mrb[0].mxu0
  %v1682 = vadd.f32 0.0, %v1681
  %v1683 = vpop.f32.mrb[0].mxu0
  %v1684 = vpop.f32.mrb[0].mxu0
  %1685 = vdwg.mxu0
  %1686 = vmatprep.subr.bf16.mxu0 %v1058
  %1687 = vmatpush1.bf16.msra.mxu0 %v1057
  %1688 = vmatprep.subr.bf16.mxu0 %v1090
  %1689 = vmatpush1.bf16.msra.mxu0 %v1089
  %1690 = vmatprep.subr.bf16.mxu0 %v1122
  %1691 = vmatpush1.bf16.msra.mxu0 %v1121
  %1692 = vmatprep.subr.bf16.mxu0 %v1154
  %1693 = vmatpush1.bf16.msra.mxu0 %v1153
  %1694 = vmatprep.subr.bf16.mxu0 %v1186
  %1695 = vmatpush1.bf16.msra.mxu0 %v1185
  %1696 = vmatprep.subr.bf16.mxu0 %v1218
  %1697 = vmatpush1.bf16.msra.mxu0 %v1217
  %1698 = vmatprep.subr.bf16.mxu0 %v1250
  %1699 = vmatpush1.bf16.msra.mxu0 %v1249
  %1700 = vmatprep.subr.bf16.mxu0 %v1282
  %1701 = vmatpush1.bf16.msra.mxu0 %v1281
  %1702 = vmatprep.subr.bf16.mxu0 0
  %1703 = vmatpush1.bf16.msra.mxu0 0
  %1704 = vmatprep.subr.bf16.mxu0 0
  %1705 = vmatpush1.bf16.msra.mxu0 0
  %1706 = vmatprep.subr.bf16.mxu0 0
  %1707 = vmatpush1.bf16.msra.mxu0 0
  %1708 = vmatprep.subr.bf16.mxu0 0
  %1709 = vmatpush1.bf16.msra.mxu0 0
  %1710 = vmatprep.subr.bf16.mxu0 0
  %1711 = vmatpush1.bf16.msra.mxu0 0
  %1712 = vmatprep.subr.bf16.mxu0 0
  %1713 = vmatpush1.bf16.msra.mxu0 0
  %1714 = vmatprep.subr.bf16.mxu0 0
  %1715 = vmatpush1.bf16.msra.mxu0 0
  %1716 = vmatprep.subr.bf16.mxu0 0
  %1717 = vmatpush1.bf16.msra.mxu0 0
  %1718 = vmatprep.mubr.bf16.mxu0 0
  %1719 = vmatmul.mubr.bf16.gmra.mrb[0].mxu0 %v282
  %v1720 = vpop.f32.mrb[0].mxu0
  %v1721 = vadd.f32 0.0, %v1720
  %v1722 = vpop.f32.mrb[0].mxu0
  %v1723 = vadd.f32 0.0, %v1722
  %v1724 = vpop.f32.mrb[0].mxu0
  %v1725 = vpop.f32.mrb[0].mxu0
  %1726 = vdwg.mxu0
  %1727 = vmatprep.subr.bf16.mxu0 %v1060
  %1728 = vmatpush1.bf16.msra.mxu0 %v1059
  %1729 = vmatprep.subr.bf16.mxu0 %v1092
  %1730 = vmatpush1.bf16.msra.mxu0 %v1091
  %1731 = vmatprep.subr.bf16.mxu0 %v1124
  %1732 = vmatpush1.bf16.msra.mxu0 %v1123
  %1733 = vmatprep.subr.bf16.mxu0 %v1156
  %1734 = vmatpush1.bf16.msra.mxu0 %v1155
  %1735 = vmatprep.subr.bf16.mxu0 %v1188
  %1736 = vmatpush1.bf16.msra.mxu0 %v1187
  %1737 = vmatprep.subr.bf16.mxu0 %v1220
  %1738 = vmatpush1.bf16.msra.mxu0 %v1219
  %1739 = vmatprep.subr.bf16.mxu0 %v1252
  %1740 = vmatpush1.bf16.msra.mxu0 %v1251
  %1741 = vmatprep.subr.bf16.mxu0 %v1284
  %1742 = vmatpush1.bf16.msra.mxu0 %v1283
  %1743 = vmatprep.subr.bf16.mxu0 0
  %1744 = vmatpush1.bf16.msra.mxu0 0
  %1745 = vmatprep.subr.bf16.mxu0 0
  %1746 = vmatpush1.bf16.msra.mxu0 0
  %1747 = vmatprep.subr.bf16.mxu0 0
  %1748 = vmatpush1.bf16.msra.mxu0 0
  %1749 = vmatprep.subr.bf16.mxu0 0
  %1750 = vmatpush1.bf16.msra.mxu0 0
  %1751 = vmatprep.subr.bf16.mxu0 0
  %1752 = vmatpush1.bf16.msra.mxu0 0
  %1753 = vmatprep.subr.bf16.mxu0 0
  %1754 = vmatpush1.bf16.msra.mxu0 0
  %1755 = vmatprep.subr.bf16.mxu0 0
  %1756 = vmatpush1.bf16.msra.mxu0 0
  %1757 = vmatprep.subr.bf16.mxu0 0
  %1758 = vmatpush1.bf16.msra.mxu0 0
  %1759 = vmatprep.mubr.bf16.mxu0 0
  %1760 = vmatmul.mubr.bf16.gmra.mrb[0].mxu0 %v282
  %v1761 = vpop.f32.mrb[0].mxu0
  %v1762 = vadd.f32 0.0, %v1761
  %v1763 = vpop.f32.mrb[0].mxu0
  %v1764 = vadd.f32 0.0, %v1763
  %v1765 = vpop.f32.mrb[0].mxu0
  %v1766 = vpop.f32.mrb[0].mxu0
  %1767 = vdwg.mxu0
  %1768 = vmatprep.subr.bf16.mxu0 %v1062
  %1769 = vmatpush1.bf16.msra.mxu0 %v1061
  %1770 = vmatprep.subr.bf16.mxu0 %v1094
  %1771 = vmatpush1.bf16.msra.mxu0 %v1093
  %1772 = vmatprep.subr.bf16.mxu0 %v1126
  %1773 = vmatpush1.bf16.msra.mxu0 %v1125
  %1774 = vmatprep.subr.bf16.mxu0 %v1158
  %1775 = vmatpush1.bf16.msra.mxu0 %v1157
  %1776 = vmatprep.subr.bf16.mxu0 %v1190
  %1777 = vmatpush1.bf16.msra.mxu0 %v1189
  %1778 = vmatprep.subr.bf16.mxu0 %v1222
  %1779 = vmatpush1.bf16.msra.mxu0 %v1221
  %1780 = vmatprep.subr.bf16.mxu0 %v1254
  %1781 = vmatpush1.bf16.msra.mxu0 %v1253
  %1782 = vmatprep.subr.bf16.mxu0 %v1286
  %1783 = vmatpush1.bf16.msra.mxu0 %v1285
  %1784 = vmatprep.subr.bf16.mxu0 0
  %1785 = vmatpush1.bf16.msra.mxu0 0
  %1786 = vmatprep.subr.bf16.mxu0 0
  %1787 = vmatpush1.bf16.msra.mxu0 0
  %1788 = vmatprep.subr.bf16.mxu0 0
  %1789 = vmatpush1.bf16.msra.mxu0 0
  %1790 = vmatprep.subr.bf16.mxu0 0
  %1791 = vmatpush1.bf16.msra.mxu0 0
  %1792 = vmatprep.subr.bf16.mxu0 0
  %1793 = vmatpush1.bf16.msra.mxu0 0
  %1794 = vmatprep.subr.bf16.mxu0 0
  %1795 = vmatpush1.bf16.msra.mxu0 0
  %1796 = vmatprep.subr.bf16.mxu0 0
  %1797 = vmatpush1.bf16.msra.mxu0 0
  %1798 = vmatprep.subr.bf16.mxu0 0
  %1799 = vmatpush1.bf16.msra.mxu0 0
  %1800 = vmatprep.mubr.bf16.mxu0 0
  %1801 = vmatmul.mubr.bf16.gmra.mrb[0].mxu0 %v282
  %v1802 = vpop.f32.mrb[0].mxu0
  %v1803 = vadd.f32 0.0, %v1802
  %v1804 = vpop.f32.mrb[0].mxu0
  %v1805 = vadd.f32 0.0, %v1804
  %v1806 = vpop.f32.mrb[0].mxu0
  %v1807 = vpop.f32.mrb[0].mxu0
  %1808 = vdwg.mxu0
  %1809 = vmatprep.subr.bf16.mxu0 %v1064
  %1810 = vmatpush1.bf16.msra.mxu0 %v1063
  %1811 = vmatprep.subr.bf16.mxu0 %v1096
  %1812 = vmatpush1.bf16.msra.mxu0 %v1095
  %1813 = vmatprep.subr.bf16.mxu0 %v1128
  %1814 = vmatpush1.bf16.msra.mxu0 %v1127
  %1815 = vmatprep.subr.bf16.mxu0 %v1160
  %1816 = vmatpush1.bf16.msra.mxu0 %v1159
  %1817 = vmatprep.subr.bf16.mxu0 %v1192
  %1818 = vmatpush1.bf16.msra.mxu0 %v1191
  %1819 = vmatprep.subr.bf16.mxu0 %v1224
  %1820 = vmatpush1.bf16.msra.mxu0 %v1223
  %1821 = vmatprep.subr.bf16.mxu0 %v1256
  %1822 = vmatpush1.bf16.msra.mxu0 %v1255
  %1823 = vmatprep.subr.bf16.mxu0 %v1288
  %1824 = vmatpush1.bf16.msra.mxu0 %v1287
  %1825 = vmatprep.subr.bf16.mxu0 0
  %1826 = vmatpush1.bf16.msra.mxu0 0
  %1827 = vmatprep.subr.bf16.mxu0 0
  %1828 = vmatpush1.bf16.msra.mxu0 0
  %1829 = vmatprep.subr.bf16.mxu0 0
  %1830 = vmatpush1.bf16.msra.mxu0 0
  %1831 = vmatprep.subr.bf16.mxu0 0
  %1832 = vmatpush1.bf16.msra.mxu0 0
  %1833 = vmatprep.subr.bf16.mxu0 0
  %1834 = vmatpush1.bf16.msra.mxu0 0
  %1835 = vmatprep.subr.bf16.mxu0 0
  %1836 = vmatpush1.bf16.msra.mxu0 0
  %1837 = vmatprep.subr.bf16.mxu0 0
  %1838 = vmatpush1.bf16.msra.mxu0 0
  %1839 = vmatprep.subr.bf16.mxu0 0
  %1840 = vmatpush1.bf16.msra.mxu0 0
  %1841 = vmatprep.mubr.bf16.mxu0 0
  %1842 = vmatmul.mubr.bf16.gmra.mrb[0].mxu0 %v282
  %v1843 = vpop.f32.mrb[0].mxu0
  %v1844 = vadd.f32 0.0, %v1843
  %v1845 = vpop.f32.mrb[0].mxu0
  %v1846 = vadd.f32 0.0, %v1845
  %v1847 = vpop.f32.mrb[0].mxu0
  %v1848 = vpop.f32.mrb[0].mxu0
  %1849 = vdwg.mxu0
  %1850 = vmatprep.subr.bf16.mxu0 %v1066
  %1851 = vmatpush1.bf16.msra.mxu0 %v1065
  %1852 = vmatprep.subr.bf16.mxu0 %v1098
  %1853 = vmatpush1.bf16.msra.mxu0 %v1097
  %1854 = vmatprep.subr.bf16.mxu0 %v1130
  %1855 = vmatpush1.bf16.msra.mxu0 %v1129
  %1856 = vmatprep.subr.bf16.mxu0 %v1162
  %1857 = vmatpush1.bf16.msra.mxu0 %v1161
  %1858 = vmatprep.subr.bf16.mxu0 %v1194
  %1859 = vmatpush1.bf16.msra.mxu0 %v1193
  %1860 = vmatprep.subr.bf16.mxu0 %v1226
  %1861 = vmatpush1.bf16.msra.mxu0 %v1225
  %1862 = vmatprep.subr.bf16.mxu0 %v1258
  %1863 = vmatpush1.bf16.msra.mxu0 %v1257
  %1864 = vmatprep.subr.bf16.mxu0 %v1290
  %1865 = vmatpush1.bf16.msra.mxu0 %v1289
  %1866 = vmatprep.subr.bf16.mxu0 0
  %1867 = vmatpush1.bf16.msra.mxu0 0
  %1868 = vmatprep.subr.bf16.mxu0 0
  %1869 = vmatpush1.bf16.msra.mxu0 0
  %1870 = vmatprep.subr.bf16.mxu0 0
  %1871 = vmatpush1.bf16.msra.mxu0 0
  %1872 = vmatprep.subr.bf16.mxu0 0
  %1873 = vmatpush1.bf16.msra.mxu0 0
  %1874 = vmatprep.subr.bf16.mxu0 0
  %1875 = vmatpush1.bf16.msra.mxu0 0
  %1876 = vmatprep.subr.bf16.mxu0 0
  %1877 = vmatpush1.bf16.msra.mxu0 0
  %1878 = vmatprep.subr.bf16.mxu0 0
  %1879 = vmatpush1.bf16.msra.mxu0 0
  %1880 = vmatprep.subr.bf16.mxu0 0
  %1881 = vmatpush1.bf16.msra.mxu0 0
  %1882 = vmatprep.mubr.bf16.mxu0 0
  %1883 = vmatmul.mubr.bf16.gmra.mrb[0].mxu0 %v282
  %v1884 = vpop.f32.mrb[0].mxu0
  %v1885 = vadd.f32 0.0, %v1884
  %v1886 = vpop.f32.mrb[0].mxu0
  %v1887 = vadd.f32 0.0, %v1886
  %v1888 = vpop.f32.mrb[0].mxu0
  %v1889 = vpop.f32.mrb[0].mxu0
  %1890 = vdwg.mxu0
  %1891 = vmatprep.subr.bf16.mxu0 %v1068
  %1892 = vmatpush1.bf16.msra.mxu0 %v1067
  %1893 = vmatprep.subr.bf16.mxu0 %v1100
  %1894 = vmatpush1.bf16.msra.mxu0 %v1099
  %1895 = vmatprep.subr.bf16.mxu0 %v1132
  %1896 = vmatpush1.bf16.msra.mxu0 %v1131
  %1897 = vmatprep.subr.bf16.mxu0 %v1164
  %1898 = vmatpush1.bf16.msra.mxu0 %v1163
  %1899 = vmatprep.subr.bf16.mxu0 %v1196
  %1900 = vmatpush1.bf16.msra.mxu0 %v1195
  %1901 = vmatprep.subr.bf16.mxu0 %v1228
  %1902 = vmatpush1.bf16.msra.mxu0 %v1227
  %1903 = vmatprep.subr.bf16.mxu0 %v1260
  %1904 = vmatpush1.bf16.msra.mxu0 %v1259
  %1905 = vmatprep.subr.bf16.mxu0 %v1292
  %1906 = vmatpush1.bf16.msra.mxu0 %v1291
  %1907 = vmatprep.subr.bf16.mxu0 0
  %1908 = vmatpush1.bf16.msra.mxu0 0
  %1909 = vmatprep.subr.bf16.mxu0 0
  %1910 = vmatpush1.bf16.msra.mxu0 0
  %1911 = vmatprep.subr.bf16.mxu0 0
  %1912 = vmatpush1.bf16.msra.mxu0 0
  %1913 = vmatprep.subr.bf16.mxu0 0
  %1914 = vmatpush1.bf16.msra.mxu0 0
  %1915 = vmatprep.subr.bf16.mxu0 0
  %1916 = vmatpush1.bf16.msra.mxu0 0
  %1917 = vmatprep.subr.bf16.mxu0 0
  %1918 = vmatpush1.bf16.msra.mxu0 0
  %1919 = vmatprep.subr.bf16.mxu0 0
  %1920 = vmatpush1.bf16.msra.mxu0 0
  %1921 = vmatprep.subr.bf16.mxu0 0
  %1922 = vmatpush1.bf16.msra.mxu0 0
  %1923 = vmatprep.mubr.bf16.mxu0 0
  %1924 = vmatmul.mubr.bf16.gmra.mrb[0].mxu0 %v282
  %v1925 = vpop.f32.mrb[0].mxu0
  %v1926 = vadd.f32 0.0, %v1925
  %v1927 = vpop.f32.mrb[0].mxu0
  %v1928 = vadd.f32 0.0, %v1927
  %v1929 = vpop.f32.mrb[0].mxu0
  %v1930 = vpop.f32.mrb[0].mxu0
  %1931 = vdwg.mxu0
  %1932 = vmatprep.subr.bf16.mxu0 %v1070
  %1933 = vmatpush1.bf16.msra.mxu0 %v1069
  %1934 = vmatprep.subr.bf16.mxu0 %v1102
  %1935 = vmatpush1.bf16.msra.mxu0 %v1101
  %1936 = vmatprep.subr.bf16.mxu0 %v1134
  %1937 = vmatpush1.bf16.msra.mxu0 %v1133
  %1938 = vmatprep.subr.bf16.mxu0 %v1166
  %1939 = vmatpush1.bf16.msra.mxu0 %v1165
  %1940 = vmatprep.subr.bf16.mxu0 %v1198
  %1941 = vmatpush1.bf16.msra.mxu0 %v1197
  %1942 = vmatprep.subr.bf16.mxu0 %v1230
  %1943 = vmatpush1.bf16.msra.mxu0 %v1229
  %1944 = vmatprep.subr.bf16.mxu0 %v1262
  %1945 = vmatpush1.bf16.msra.mxu0 %v1261
  %1946 = vmatprep.subr.bf16.mxu0 %v1294
  %1947 = vmatpush1.bf16.msra.mxu0 %v1293
  %1948 = vmatprep.subr.bf16.mxu0 0
  %1949 = vmatpush1.bf16.msra.mxu0 0
  %1950 = vmatprep.subr.bf16.mxu0 0
  %1951 = vmatpush1.bf16.msra.mxu0 0
  %1952 = vmatprep.subr.bf16.mxu0 0
  %1953 = vmatpush1.bf16.msra.mxu0 0
  %1954 = vmatprep.subr.bf16.mxu0 0
  %1955 = vmatpush1.bf16.msra.mxu0 0
  %1956 = vmatprep.subr.bf16.mxu0 0
  %1957 = vmatpush1.bf16.msra.mxu0 0
  %1958 = vmatprep.subr.bf16.mxu0 0
  %1959 = vmatpush1.bf16.msra.mxu0 0
  %1960 = vmatprep.subr.bf16.mxu0 0
  %1961 = vmatpush1.bf16.msra.mxu0 0
  %1962 = vmatprep.subr.bf16.mxu0 0
  %1963 = vmatpush1.bf16.msra.mxu0 0
  %1964 = vmatprep.mubr.bf16.mxu0 0
  %1965 = vmatmul.mubr.bf16.gmra.mrb[0].mxu0 %v282
  %v1966 = vpop.f32.mrb[0].mxu0
  %v1967 = vadd.f32 0.0, %v1966
  %v1968 = vpop.f32.mrb[0].mxu0
  %v1969 = vadd.f32 0.0, %v1968
  %v1970 = vpop.f32.mrb[0].mxu0
  %v1971 = vpop.f32.mrb[0].mxu0
  %1972 = vdwg.mxu0
  %1973 = vmatprep.subr.bf16.mxu0 %v1072
  %1974 = vmatpush1.bf16.msra.mxu0 %v1071
  %1975 = vmatprep.subr.bf16.mxu0 %v1104
  %1976 = vmatpush1.bf16.msra.mxu0 %v1103
  %1977 = vmatprep.subr.bf16.mxu0 %v1136
  %1978 = vmatpush1.bf16.msra.mxu0 %v1135
  %1979 = vmatprep.subr.bf16.mxu0 %v1168
  %1980 = vmatpush1.bf16.msra.mxu0 %v1167
  %1981 = vmatprep.subr.bf16.mxu0 %v1200
  %1982 = vmatpush1.bf16.msra.mxu0 %v1199
  %1983 = vmatprep.subr.bf16.mxu0 %v1232
  %1984 = vmatpush1.bf16.msra.mxu0 %v1231
  %1985 = vmatprep.subr.bf16.mxu0 %v1264
  %1986 = vmatpush1.bf16.msra.mxu0 %v1263
  %1987 = vmatprep.subr.bf16.mxu0 %v1296
  %1988 = vmatpush1.bf16.msra.mxu0 %v1295
  %1989 = vmatprep.subr.bf16.mxu0 0
  %1990 = vmatpush1.bf16.msra.mxu0 0
  %1991 = vmatprep.subr.bf16.mxu0 0
  %1992 = vmatpush1.bf16.msra.mxu0 0
  %1993 = vmatprep.subr.bf16.mxu0 0
  %1994 = vmatpush1.bf16.msra.mxu0 0
  %1995 = vmatprep.subr.bf16.mxu0 0
  %1996 = vmatpush1.bf16.msra.mxu0 0
  %1997 = vmatprep.subr.bf16.mxu0 0
  %1998 = vmatpush1.bf16.msra.mxu0 0
  %1999 = vmatprep.subr.bf16.mxu0 0
  %2000 = vmatpush1.bf16.msra.mxu0 0
  %2001 = vmatprep.subr.bf16.mxu0 0
  %2002 = vmatpush1.bf16.msra.mxu0 0
  %2003 = vmatprep.subr.bf16.mxu0 0
  %2004 = vmatpush1.bf16.msra.mxu0 0
  %2005 = vmatprep.mubr.bf16.mxu0 0
  %2006 = vmatmul.mubr.bf16.gmra.mrb[0].mxu0 %v282
  %v2007 = vpop.f32.mrb[0].mxu0
  %v2008 = vadd.f32 0.0, %v2007
  %v2009 = vpop.f32.mrb[0].mxu0
  %v2010 = vadd.f32 0.0, %v2009
  %v2011 = vpop.f32.mrb[0].mxu0
  %v2012 = vpop.f32.mrb[0].mxu0
  %2013 = vdwg.mxu0
  %2014 = vmatprep.subr.bf16.mxu0 %v1074
  %2015 = vmatpush1.bf16.msra.mxu0 %v1073
  %2016 = vmatprep.subr.bf16.mxu0 %v1106
  %2017 = vmatpush1.bf16.msra.mxu0 %v1105
  %2018 = vmatprep.subr.bf16.mxu0 %v1138
  %2019 = vmatpush1.bf16.msra.mxu0 %v1137
  %2020 = vmatprep.subr.bf16.mxu0 %v1170
  %2021 = vmatpush1.bf16.msra.mxu0 %v1169
  %2022 = vmatprep.subr.bf16.mxu0 %v1202
  %2023 = vmatpush1.bf16.msra.mxu0 %v1201
  %2024 = vmatprep.subr.bf16.mxu0 %v1234
  %2025 = vmatpush1.bf16.msra.mxu0 %v1233
  %2026 = vmatprep.subr.bf16.mxu0 %v1266
  %2027 = vmatpush1.bf16.msra.mxu0 %v1265
  %2028 = vmatprep.subr.bf16.mxu0 %v1298
  %2029 = vmatpush1.bf16.msra.mxu0 %v1297
  %2030 = vmatprep.subr.bf16.mxu0 0
  %2031 = vmatpush1.bf16.msra.mxu0 0
  %2032 = vmatprep.subr.bf16.mxu0 0
  %2033 = vmatpush1.bf16.msra.mxu0 0
  %2034 = vmatprep.subr.bf16.mxu0 0
  %2035 = vmatpush1.bf16.msra.mxu0 0
  %2036 = vmatprep.subr.bf16.mxu0 0
  %2037 = vmatpush1.bf16.msra.mxu0 0
  %2038 = vmatprep.subr.bf16.mxu0 0
  %2039 = vmatpush1.bf16.msra.mxu0 0
  %2040 = vmatprep.subr.bf16.mxu0 0
  %2041 = vmatpush1.bf16.msra.mxu0 0
  %2042 = vmatprep.subr.bf16.mxu0 0
  %2043 = vmatpush1.bf16.msra.mxu0 0
  %2044 = vmatprep.subr.bf16.mxu0 0
  %2045 = vmatpush1.bf16.msra.mxu0 0
  %2046 = vmatprep.mubr.bf16.mxu0 0
  %2047 = vmatmul.mubr.bf16.gmra.mrb[0].mxu0 %v282
  %v2048 = vpop.f32.mrb[0].mxu0
  %v2049 = vadd.f32 0.0, %v2048
  %v2050 = vpop.f32.mrb[0].mxu0
  %v2051 = vadd.f32 0.0, %v2050
  %v2052 = vpop.f32.mrb[0].mxu0
  %v2053 = vpop.f32.mrb[0].mxu0
  %2054 = vdwg.mxu0
  %2055 = vmatprep.subr.bf16.mxu0 %v1076
  %2056 = vmatpush1.bf16.msra.mxu0 %v1075
  %2057 = vmatprep.subr.bf16.mxu0 %v1108
  %2058 = vmatpush1.bf16.msra.mxu0 %v1107
  %2059 = vmatprep.subr.bf16.mxu0 %v1140
  %2060 = vmatpush1.bf16.msra.mxu0 %v1139
  %2061 = vmatprep.subr.bf16.mxu0 %v1172
  %2062 = vmatpush1.bf16.msra.mxu0 %v1171
  %2063 = vmatprep.subr.bf16.mxu0 %v1204
  %2064 = vmatpush1.bf16.msra.mxu0 %v1203
  %2065 = vmatprep.subr.bf16.mxu0 %v1236
  %2066 = vmatpush1.bf16.msra.mxu0 %v1235
  %2067 = vmatprep.subr.bf16.mxu0 %v1268
  %2068 = vmatpush1.bf16.msra.mxu0 %v1267
  %2069 = vmatprep.subr.bf16.mxu0 %v1300
  %2070 = vmatpush1.bf16.msra.mxu0 %v1299
  %2071 = vmatprep.subr.bf16.mxu0 0
  %2072 = vmatpush1.bf16.msra.mxu0 0
  %2073 = vmatprep.subr.bf16.mxu0 0
  %2074 = vmatpush1.bf16.msra.mxu0 0
  %2075 = vmatprep.subr.bf16.mxu0 0
  %2076 = vmatpush1.bf16.msra.mxu0 0
  %2077 = vmatprep.subr.bf16.mxu0 0
  %2078 = vmatpush1.bf16.msra.mxu0 0
  %2079 = vmatprep.subr.bf16.mxu0 0
  %2080 = vmatpush1.bf16.msra.mxu0 0
  %2081 = vmatprep.subr.bf16.mxu0 0
  %2082 = vmatpush1.bf16.msra.mxu0 0
  %2083 = vmatprep.subr.bf16.mxu0 0
  %2084 = vmatpush1.bf16.msra.mxu0 0
  %2085 = vmatprep.subr.bf16.mxu0 0
  %2086 = vmatpush1.bf16.msra.mxu0 0
  %2087 = vmatprep.mubr.bf16.mxu0 0
  %2088 = vmatmul.mubr.bf16.gmra.mrb[0].mxu0 %v282
  %v2089 = vpop.f32.mrb[0].mxu0
  %v2090 = vadd.f32 0.0, %v2089
  %v2091 = vpop.f32.mrb[0].mxu0
  %v2092 = vadd.f32 0.0, %v2091
  %v2093 = vpop.f32.mrb[0].mxu0
  %v2094 = vpop.f32.mrb[0].mxu0
  %2095 = vdwg.mxu0
  %2096 = vmatprep.subr.bf16.mxu0 %v1078
  %2097 = vmatpush1.bf16.msra.mxu0 %v1077
  %2098 = vmatprep.subr.bf16.mxu0 %v1110
  %2099 = vmatpush1.bf16.msra.mxu0 %v1109
  %2100 = vmatprep.subr.bf16.mxu0 %v1142
  %2101 = vmatpush1.bf16.msra.mxu0 %v1141
  %2102 = vmatprep.subr.bf16.mxu0 %v1174
  %2103 = vmatpush1.bf16.msra.mxu0 %v1173
  %2104 = vmatprep.subr.bf16.mxu0 %v1206
  %2105 = vmatpush1.bf16.msra.mxu0 %v1205
  %2106 = vmatprep.subr.bf16.mxu0 %v1238
  %2107 = vmatpush1.bf16.msra.mxu0 %v1237
  %2108 = vmatprep.subr.bf16.mxu0 %v1270
  %2109 = vmatpush1.bf16.msra.mxu0 %v1269
  %2110 = vmatprep.subr.bf16.mxu0 %v1302
  %2111 = vmatpush1.bf16.msra.mxu0 %v1301
  %2112 = vmatprep.subr.bf16.mxu0 0
  %2113 = vmatpush1.bf16.msra.mxu0 0
  %2114 = vmatprep.subr.bf16.mxu0 0
  %2115 = vmatpush1.bf16.msra.mxu0 0
  %2116 = vmatprep.subr.bf16.mxu0 0
  %2117 = vmatpush1.bf16.msra.mxu0 0
  %2118 = vmatprep.subr.bf16.mxu0 0
  %2119 = vmatpush1.bf16.msra.mxu0 0
  %2120 = vmatprep.subr.bf16.mxu0 0
  %2121 = vmatpush1.bf16.msra.mxu0 0
  %2122 = vmatprep.subr.bf16.mxu0 0
  %2123 = vmatpush1.bf16.msra.mxu0 0
  %2124 = vmatprep.subr.bf16.mxu0 0
  %2125 = vmatpush1.bf16.msra.mxu0 0
  %2126 = vmatprep.subr.bf16.mxu0 0
  %2127 = vmatpush1.bf16.msra.mxu0 0
  %2128 = vmatprep.mubr.bf16.mxu0 0
  %2129 = vmatmul.mubr.bf16.gmra.mrb[0].mxu0 %v282
  %v2130 = vpop.f32.mrb[0].mxu0
  %v2131 = vadd.f32 0.0, %v2130
  %v2132 = vpop.f32.mrb[0].mxu0
  %v2133 = vadd.f32 0.0, %v2132
  %v2134 = vpop.f32.mrb[0].mxu0
  %v2135 = vpop.f32.mrb[0].mxu0
  %2136 = vdwg.mxu0
  %2137 = vmatprep.subr.bf16.mxu0 %v1080
  %2138 = vmatpush1.bf16.msra.mxu0 %v1079
  %2139 = vmatprep.subr.bf16.mxu0 %v1112
  %2140 = vmatpush1.bf16.msra.mxu0 %v1111
  %2141 = vmatprep.subr.bf16.mxu0 %v1144
  %2142 = vmatpush1.bf16.msra.mxu0 %v1143
  %2143 = vmatprep.subr.bf16.mxu0 %v1176
  %2144 = vmatpush1.bf16.msra.mxu0 %v1175
  %2145 = vmatprep.subr.bf16.mxu0 %v1208
  %2146 = vmatpush1.bf16.msra.mxu0 %v1207
  %2147 = vmatprep.subr.bf16.mxu0 %v1240
  %2148 = vmatpush1.bf16.msra.mxu0 %v1239
  %2149 = vmatprep.subr.bf16.mxu0 %v1272
  %2150 = vmatpush1.bf16.msra.mxu0 %v1271
  %2151 = vmatprep.subr.bf16.mxu0 %v1304
  %2152 = vmatpush1.bf16.msra.mxu0 %v1303
  %2153 = vmatprep.subr.bf16.mxu0 0
  %2154 = vmatpush1.bf16.msra.mxu0 0
  %2155 = vmatprep.subr.bf16.mxu0 0
  %2156 = vmatpush1.bf16.msra.mxu0 0
  %2157 = vmatprep.subr.bf16.mxu0 0
  %2158 = vmatpush1.bf16.msra.mxu0 0
  %2159 = vmatprep.subr.bf16.mxu0 0
  %2160 = vmatpush1.bf16.msra.mxu0 0
  %2161 = vmatprep.subr.bf16.mxu0 0
  %2162 = vmatpush1.bf16.msra.mxu0 0
  %2163 = vmatprep.subr.bf16.mxu0 0
  %2164 = vmatpush1.bf16.msra.mxu0 0
  %2165 = vmatprep.subr.bf16.mxu0 0
  %2166 = vmatpush1.bf16.msra.mxu0 0
  %2167 = vmatprep.subr.bf16.mxu0 0
  %2168 = vmatpush1.bf16.msra.mxu0 0
  %2169 = vmatprep.mubr.bf16.mxu0 0
  %2170 = vmatmul.mubr.bf16.gmra.mrb[0].mxu0 %v282
  %v2171 = vpop.f32.mrb[0].mxu0
  %v2172 = vadd.f32 0.0, %v2171
  %v2173 = vpop.f32.mrb[0].mxu0
  %v2174 = vadd.f32 0.0, %v2173
  %v2175 = vpop.f32.mrb[0].mxu0
  %v2176 = vpop.f32.mrb[0].mxu0
  %2177 = vdwg.mxu0
  %2178 = vmatprep.subr.bf16.mxu0 %v1082
  %2179 = vmatpush1.bf16.msra.mxu0 %v1081
  %2180 = vmatprep.subr.bf16.mxu0 %v1114
  %2181 = vmatpush1.bf16.msra.mxu0 %v1113
  %2182 = vmatprep.subr.bf16.mxu0 %v1146
  %2183 = vmatpush1.bf16.msra.mxu0 %v1145
  %2184 = vmatprep.subr.bf16.mxu0 %v1178
  %2185 = vmatpush1.bf16.msra.mxu0 %v1177
  %2186 = vmatprep.subr.bf16.mxu0 %v1210
  %2187 = vmatpush1.bf16.msra.mxu0 %v1209
  %2188 = vmatprep.subr.bf16.mxu0 %v1242
  %2189 = vmatpush1.bf16.msra.mxu0 %v1241
  %2190 = vmatprep.subr.bf16.mxu0 %v1274
  %2191 = vmatpush1.bf16.msra.mxu0 %v1273
  %2192 = vmatprep.subr.bf16.mxu0 %v1306
  %2193 = vmatpush1.bf16.msra.mxu0 %v1305
  %2194 = vmatprep.subr.bf16.mxu0 0
  %2195 = vmatpush1.bf16.msra.mxu0 0
  %2196 = vmatprep.subr.bf16.mxu0 0
  %2197 = vmatpush1.bf16.msra.mxu0 0
  %2198 = vmatprep.subr.bf16.mxu0 0
  %2199 = vmatpush1.bf16.msra.mxu0 0
  %2200 = vmatprep.subr.bf16.mxu0 0
  %2201 = vmatpush1.bf16.msra.mxu0 0
  %2202 = vmatprep.subr.bf16.mxu0 0
  %2203 = vmatpush1.bf16.msra.mxu0 0
  %2204 = vmatprep.subr.bf16.mxu0 0
  %2205 = vmatpush1.bf16.msra.mxu0 0
  %2206 = vmatprep.subr.bf16.mxu0 0
  %2207 = vmatpush1.bf16.msra.mxu0 0
  %2208 = vmatprep.subr.bf16.mxu0 0
  %2209 = vmatpush1.bf16.msra.mxu0 0
  %2210 = vmatprep.mubr.bf16.mxu0 0
  %2211 = vmatmul.mubr.bf16.gmra.mrb[0].mxu0 %v282
  %v2212 = vpop.f32.mrb[0].mxu0
  %v2213 = vadd.f32 0.0, %v2212
  %v2214 = vpop.f32.mrb[0].mxu0
  %v2215 = vadd.f32 0.0, %v2214
  %v2216 = vpop.f32.mrb[0].mxu0
  %v2217 = vpop.f32.mrb[0].mxu0
  %2218 = vdwg.mxu0
  %v2223 = vlaneseq
  %v2224 = vshrl.u32 %v2223, 7
  %v2225 = vsub.s32 0, %v2224
  %v2226 = vrot.slane %v276, %v2225
  %v2227 = vlaneseq
  %v2228 = vshrl.u32 %v2227, 7
  %v2229 = vsub.s32 1, %v2228
  %v2230 = vrot.slane %v276, %v2229
  %v2231 = vlaneseq
  %v2232 = vshrl.u32 %v2231, 7
  %v2233 = vsub.s32 2, %v2232
  %v2234 = vrot.slane %v276, %v2233
  %v2235 = vlaneseq
  %v2236 = vshrl.u32 %v2235, 7
  %v2237 = vsub.s32 3, %v2236
  %v2238 = vrot.slane %v276, %v2237
  %v2239 = vlaneseq
  %v2240 = vshrl.u32 %v2239, 7
  %v2241 = vsub.s32 4, %v2240
  %v2242 = vrot.slane %v276, %v2241
  %v2243 = vlaneseq
  %v2244 = vshrl.u32 %v2243, 7
  %v2245 = vsub.s32 5, %v2244
  %v2246 = vrot.slane %v276, %v2245
  %v2247 = vlaneseq
  %v2248 = vshrl.u32 %v2247, 7
  %v2249 = vsub.s32 6, %v2248
  %v2250 = vrot.slane %v276, %v2249
  %v2251 = vlaneseq
  %v2252 = vshrl.u32 %v2251, 7
  %v2253 = vsub.s32 7, %v2252
  %v2254 = vrot.slane %v276, %v2253
  %v2255 = vlaneseq
  %v2256 = vshrl.u32 %v2255, 7
  %v2257 = vsub.s32 0, %v2256
  %v2258 = vrot.slane %v277, %v2257
  %v2259 = vlaneseq
  %v2260 = vshrl.u32 %v2259, 7
  %v2261 = vsub.s32 1, %v2260
  %v2262 = vrot.slane %v277, %v2261
  %v2263 = vlaneseq
  %v2264 = vshrl.u32 %v2263, 7
  %v2265 = vsub.s32 2, %v2264
  %v2266 = vrot.slane %v277, %v2265
  %v2267 = vlaneseq
  %v2268 = vshrl.u32 %v2267, 7
  %v2269 = vsub.s32 3, %v2268
  %v2270 = vrot.slane %v277, %v2269
  %v2271 = vlaneseq
  %v2272 = vshrl.u32 %v2271, 7
  %v2273 = vsub.s32 4, %v2272
  %v2274 = vrot.slane %v277, %v2273
  %v2275 = vlaneseq
  %v2276 = vshrl.u32 %v2275, 7
  %v2277 = vsub.s32 5, %v2276
  %v2278 = vrot.slane %v277, %v2277
  %v2279 = vlaneseq
  %v2280 = vshrl.u32 %v2279, 7
  %v2281 = vsub.s32 6, %v2280
  %v2282 = vrot.slane %v277, %v2281
  %v2283 = vlaneseq
  %v2284 = vshrl.u32 %v2283, 7
  %v2285 = vsub.s32 7, %v2284
  %v2286 = vrot.slane %v277, %v2285
  %v2287 = vlaneseq
  %v2288 = vshrl.u32 %v2287, 7
  %v2289 = vsub.s32 0, %v2288
  %v2290 = vrot.slane %v278, %v2289
  %v2291 = vlaneseq
  %v2292 = vshrl.u32 %v2291, 7
  %v2293 = vsub.s32 1, %v2292
  %v2294 = vrot.slane %v278, %v2293
  %v2295 = vlaneseq
  %v2296 = vshrl.u32 %v2295, 7
  %v2297 = vsub.s32 2, %v2296
  %v2298 = vrot.slane %v278, %v2297
  %v2299 = vlaneseq
  %v2300 = vshrl.u32 %v2299, 7
  %v2301 = vsub.s32 3, %v2300
  %v2302 = vrot.slane %v278, %v2301
  %v2303 = vlaneseq
  %v2304 = vshrl.u32 %v2303, 7
  %v2305 = vsub.s32 4, %v2304
  %v2306 = vrot.slane %v278, %v2305
  %v2307 = vlaneseq
  %v2308 = vshrl.u32 %v2307, 7
  %v2309 = vsub.s32 5, %v2308
  %v2310 = vrot.slane %v278, %v2309
  %v2311 = vlaneseq
  %v2312 = vshrl.u32 %v2311, 7
  %v2313 = vsub.s32 6, %v2312
  %v2314 = vrot.slane %v278, %v2313
  %v2315 = vlaneseq
  %v2316 = vshrl.u32 %v2315, 7
  %v2317 = vsub.s32 7, %v2316
  %v2318 = vrot.slane %v278, %v2317
  %v2319 = vlaneseq
  %v2320 = vshrl.u32 %v2319, 7
  %v2321 = vsub.s32 0, %v2320
  %v2322 = vrot.slane %v279, %v2321
  %v2323 = vlaneseq
  %v2324 = vshrl.u32 %v2323, 7
  %v2325 = vsub.s32 1, %v2324
  %v2326 = vrot.slane %v279, %v2325
  %v2327 = vlaneseq
  %v2328 = vshrl.u32 %v2327, 7
  %v2329 = vsub.s32 2, %v2328
  %v2330 = vrot.slane %v279, %v2329
  %v2331 = vlaneseq
  %v2332 = vshrl.u32 %v2331, 7
  %v2333 = vsub.s32 3, %v2332
  %v2334 = vrot.slane %v279, %v2333
  %v2335 = vlaneseq
  %v2336 = vshrl.u32 %v2335, 7
  %v2337 = vsub.s32 4, %v2336
  %v2338 = vrot.slane %v279, %v2337
  %v2339 = vlaneseq
  %v2340 = vshrl.u32 %v2339, 7
  %v2341 = vsub.s32 5, %v2340
  %v2342 = vrot.slane %v279, %v2341
  %v2343 = vlaneseq
  %v2344 = vshrl.u32 %v2343, 7
  %v2345 = vsub.s32 6, %v2344
  %v2346 = vrot.slane %v279, %v2345
  %v2347 = vlaneseq
  %v2348 = vshrl.u32 %v2347, 7
  %v2349 = vsub.s32 7, %v2348
  %v2350 = vrot.slane %v279, %v2349
  %vm2383 = vcmp.eq.f32.partialorder %v1598, %v2226
  %vm2384 = vcmp.eq.f32.partialorder %v1600, %v2230
  %vm2385 = vcmp.eq.f32.partialorder %v1639, %v2234
  %vm2386 = vcmp.eq.f32.partialorder %v1641, %v2238
  %vm2387 = vcmp.eq.f32.partialorder %v1680, %v2242
  %vm2388 = vcmp.eq.f32.partialorder %v1682, %v2246
  %vm2389 = vcmp.eq.f32.partialorder %v1721, %v2250
  %vm2390 = vcmp.eq.f32.partialorder %v1723, %v2254
  %vm2391 = vcmp.eq.f32.partialorder %v1762, %v2258
  %vm2392 = vcmp.eq.f32.partialorder %v1764, %v2262
  %vm2393 = vcmp.eq.f32.partialorder %v1803, %v2266
  %vm2394 = vcmp.eq.f32.partialorder %v1805, %v2270
  %vm2395 = vcmp.eq.f32.partialorder %v1844, %v2274
  %vm2396 = vcmp.eq.f32.partialorder %v1846, %v2278
  %vm2397 = vcmp.eq.f32.partialorder %v1885, %v2282
  %vm2398 = vcmp.eq.f32.partialorder %v1887, %v2286
  %vm2399 = vcmp.eq.f32.partialorder %v1926, %v2290
  %vm2400 = vcmp.eq.f32.partialorder %v1928, %v2294
  %vm2401 = vcmp.eq.f32.partialorder %v1967, %v2298
  %vm2402 = vcmp.eq.f32.partialorder %v1969, %v2302
  %vm2403 = vcmp.eq.f32.partialorder %v2008, %v2306
  %vm2404 = vcmp.eq.f32.partialorder %v2010, %v2310
  %vm2405 = vcmp.eq.f32.partialorder %v2049, %v2314
  %vm2406 = vcmp.eq.f32.partialorder %v2051, %v2318
  %vm2407 = vcmp.eq.f32.partialorder %v2090, %v2322
  %vm2408 = vcmp.eq.f32.partialorder %v2092, %v2326
  %vm2409 = vcmp.eq.f32.partialorder %v2131, %v2330
  %vm2410 = vcmp.eq.f32.partialorder %v2133, %v2334
  %vm2411 = vcmp.eq.f32.partialorder %v2172, %v2338
  %vm2412 = vcmp.eq.f32.partialorder %v2174, %v2342
  %vm2413 = vcmp.eq.f32.partialorder %v2213, %v2346
  %vm2414 = vcmp.eq.f32.partialorder %v2215, %v2350
  %v2415 = vsel %vm2383, 1, 0
  %v2416 = vsel %vm2384, 1, 0
  %v2417 = vsel %vm2385, 1, 0
  %v2418 = vsel %vm2386, 1, 0
  %v2419 = vsel %vm2387, 1, 0
  %v2420 = vsel %vm2388, 1, 0
  %v2421 = vsel %vm2389, 1, 0
  %v2422 = vsel %vm2390, 1, 0
  %v2423 = vsel %vm2391, 1, 0
  %v2424 = vsel %vm2392, 1, 0
  %v2425 = vsel %vm2393, 1, 0
  %v2426 = vsel %vm2394, 1, 0
  %v2427 = vsel %vm2395, 1, 0
  %v2428 = vsel %vm2396, 1, 0
  %v2429 = vsel %vm2397, 1, 0
  %v2430 = vsel %vm2398, 1, 0
  %v2431 = vsel %vm2399, 1, 0
  %v2432 = vsel %vm2400, 1, 0
  %v2433 = vsel %vm2401, 1, 0
  %v2434 = vsel %vm2402, 1, 0
  %v2435 = vsel %vm2403, 1, 0
  %v2436 = vsel %vm2404, 1, 0
  %v2437 = vsel %vm2405, 1, 0
  %v2438 = vsel %vm2406, 1, 0
  %v2439 = vsel %vm2407, 1, 0
  %v2440 = vsel %vm2408, 1, 0
  %v2441 = vsel %vm2409, 1, 0
  %v2442 = vsel %vm2410, 1, 0
  %v2443 = vsel %vm2411, 1, 0
  %v2444 = vsel %vm2412, 1, 0
  %v2445 = vsel %vm2413, 1, 0
  %v2446 = vsel %vm2414, 1, 0
  %2447 = vst [vmem:[%s3] sm:$0xff] %v2415
  %2448 = vst [vmem:[%s3 + $0x8] sm:$0xff] %v2416
  %2449 = vst [vmem:[%s3 + $0x10] sm:$0xff] %v2417
  %2450 = vst [vmem:[%s3 + $0x18] sm:$0xff] %v2418
  %2451 = vst [vmem:[%s3 + $0x20] sm:$0xff] %v2419
  %2452 = vst [vmem:[%s3 + $0x28] sm:$0xff] %v2420
  %2453 = vst [vmem:[%s3 + $0x30] sm:$0xff] %v2421
  %2454 = vst [vmem:[%s3 + $0x38] sm:$0xff] %v2422
  %2455 = vst [vmem:[%s3 + $0x40] sm:$0xff] %v2423
  %2456 = vst [vmem:[%s3 + $0x48] sm:$0xff] %v2424
  %2457 = vst [vmem:[%s3 + $0x50] sm:$0xff] %v2425
  %2458 = vst [vmem:[%s3 + $0x58] sm:$0xff] %v2426
  %2459 = vst [vmem:[%s3 + $0x60] sm:$0xff] %v2427
  %2460 = vst [vmem:[%s3 + $0x68] sm:$0xff] %v2428
  %2461 = vst [vmem:[%s3 + $0x70] sm:$0xff] %v2429
  %2462 = vst [vmem:[%s3 + $0x78] sm:$0xff] %v2430
  %2463 = vst [vmem:[%s3 + $0x80] sm:$0xff] %v2431
  %2464 = vst [vmem:[%s3 + $0x88] sm:$0xff] %v2432
  %2465 = vst [vmem:[%s3 + $0x90] sm:$0xff] %v2433
  %2466 = vst [vmem:[%s3 + $0x98] sm:$0xff] %v2434
  %2467 = vst [vmem:[%s3 + $0xa0] sm:$0xff] %v2435
  %2468 = vst [vmem:[%s3 + $0xa8] sm:$0xff] %v2436
  %2469 = vst [vmem:[%s3 + $0xb0] sm:$0xff] %v2437
  %2470 = vst [vmem:[%s3 + $0xb8] sm:$0xff] %v2438
  %2471 = vst [vmem:[%s3 + $0xc0] sm:$0xff] %v2439
  %2472 = vst [vmem:[%s3 + $0xc8] sm:$0xff] %v2440
  %2473 = vst [vmem:[%s3 + $0xd0] sm:$0xff] %v2441
  %2474 = vst [vmem:[%s3 + $0xd8] sm:$0xff] %v2442
  %2475 = vst [vmem:[%s3 + $0xe0] sm:$0xff] %v2443
  %2476 = vst [vmem:[%s3 + $0xe8] sm:$0xff] %v2444
  %2477 = vst [vmem:[%s3 + $0xf0] sm:$0xff] %v2445
  %2478 = vst [vmem:[%s3 + $0xf8] sm:$0xff] %v2446
  // Predicated region
  $region14: #{_one_hot_impl.1} parent=0 // pred_check
    _
  $region15: #{_one_hot_impl.1} parent=0 // pred_check_branch
    %2480 = sbr.rel (0) target = $region17
  $region16: #{_one_hot_impl.1} parent=0 // pred_region
    _
  $region17: #{_one_hot_impl.1} parent=0 // pred_fallthru
    _
  // Predicated region
  $region18: #{_one_hot_impl.1} parent=0 // pred_check
    _
  $region19: #{_one_hot_impl.1} parent=0 // pred_check_branch
    %2482 = sbr.rel (0) target = $region21
  $region20: #{_one_hot_impl.1} parent=0 // pred_region
    _
  $region21: #{_one_hot_impl.1} parent=0 // pred_fallthru
    _

</llo_original>
